<compile_context>
chip_gen: v7x
topology: tpu7x:2x2x1
jax: 0.10.0
libtpu: 0.0.40
codegen_flags: <defaults>
</compile_context>

<pallas_src>
import functools

import jax
import jax.numpy as jnp
from jax.experimental import pallas as pl
from jax.experimental.pallas import tpu as pltpu

D_MODEL = 128
D_FF = 256
N_HEADS = 8          # heads do not change the collapsed seq_len=1 math
N_LAYERS = 3
N_CLASSES = 2
N_CLASSES_PAD = 8    # small classifier pad (aligned block, tiny writeback)
EPS = 1e-5           # nn.LayerNorm default


def _round_up(n, m):
    return ((n + m - 1) // m) * m


def _cdiv(a, b):
    return (a + b - 1) // b


def _layernorm(x, gamma, beta):
    # One-pass statistics: mean and mean(x^2) reductions are independent,
    # so both XLU reductions can issue without serializing.
    mean = jnp.mean(x, axis=-1, keepdims=True)
    mean_sq = jnp.mean(x * x, axis=-1, keepdims=True)
    var = jnp.maximum(mean_sq - mean * mean, 0.0)
    inv = jax.lax.rsqrt(var + EPS)
    return (x - mean) * (inv * gamma) + beta


def transformer_kernel(x_ref, w_emb, b_emb,
                       w_attn, b_attn,
                       ln1_g, ln1_b,
                       w1, b1, w2, b2,
                       ln2_g, ln2_b,
                       wfc, bfc,
                       out_ref, *, ffn_bf16):
    bf16 = jnp.bfloat16
    # x is already bf16 (cast in the wrapper); accumulate in f32.
    h = jnp.dot(x_ref[...], w_emb[...],
                preferred_element_type=jnp.float32) + b_emb[...]

    for l in range(N_LAYERS):
        # --- self-attention, seq_len == 1 ---
        # softmax over one key == 1.0 exactly -> attention output == V.
        # out_proj(v_proj(.)) AND the residual were folded into one affine map
        # (w_attn = I + wv@wo, b_attn = bv@wo + bo), so this single matmul
        # directly produces (h + attn).
        h_attn = jnp.dot(h.astype(bf16), w_attn[l],
                         preferred_element_type=jnp.float32) + b_attn[l]
        # post-norm (nn.TransformerEncoderLayer default norm_first=False)
        h = _layernorm(h_attn, ln1_g[l], ln1_b[l])

        # --- feed-forward: 128 -> 256 (relu) -> 128 ---
        f = jnp.dot(h.astype(bf16), w1[l], preferred_element_type=jnp.float32)
        if ffn_bf16:
            # v6e/v7x have bf16 VALUs: do the widest elementwise pass packed.
            f = jnp.maximum(f.astype(bf16) + b1[l], 0)
        else:
            # v5e VPU has no bf16 path: keep elementwise math in f32.
            f = jnp.maximum(f + b1[l], 0.0).astype(bf16)
        f = jnp.dot(f, w2[l], preferred_element_type=jnp.float32) + b2[l]
        h = _layernorm(h + f, ln2_g[l], ln2_b[l])

    # Dropout(0.6) is identity at inference (eval mode).
    # Classifier padded 2 -> 8 output columns; wrapper slices [:, :2].
    out_ref[...] = jnp.dot(h.astype(bf16), wfc[...],
                           preferred_element_type=jnp.float32) + bfc[...]


def init_params(key, input_dim):
    """Params in the original (unfolded, f32) layout; weights are (in, out)."""
    ks = jax.random.split(key, 16)
    s = 0.05
    f32 = jnp.float32
    p = {}
    p["w_emb"] = jax.random.normal(ks[0], (input_dim, D_MODEL), f32) * s
    p["b_emb"] = jax.random.normal(ks[1], (1, D_MODEL), f32) * s
    # only the V slice of PyTorch's in_proj_weight matters for seq_len=1
    p["wv"] = jax.random.normal(ks[2], (N_LAYERS, D_MODEL, D_MODEL), f32) * s
    p["bv"] = jax.random.normal(ks[3], (N_LAYERS, 1, D_MODEL), f32) * s
    p["wo"] = jax.random.normal(ks[4], (N_LAYERS, D_MODEL, D_MODEL), f32) * s
    p["bo"] = jax.random.normal(ks[5], (N_LAYERS, 1, D_MODEL), f32) * s
    p["ln1_g"] = jnp.ones((N_LAYERS, 1, D_MODEL), f32)
    p["ln1_b"] = jnp.zeros((N_LAYERS, 1, D_MODEL), f32)
    p["w1"] = jax.random.normal(ks[6], (N_LAYERS, D_MODEL, D_FF), f32) * s
    p["b1"] = jax.random.normal(ks[7], (N_LAYERS, 1, D_FF), f32) * s
    p["w2"] = jax.random.normal(ks[8], (N_LAYERS, D_FF, D_MODEL), f32) * s
    p["b2"] = jax.random.normal(ks[9], (N_LAYERS, 1, D_MODEL), f32) * s
    p["ln2_g"] = jnp.ones((N_LAYERS, 1, D_MODEL), f32)
    p["ln2_b"] = jnp.zeros((N_LAYERS, 1, D_MODEL), f32)
    p["wfc"] = jax.random.normal(ks[10], (D_MODEL, N_CLASSES), f32) * s
    p["bfc"] = jax.random.normal(ks[11], (1, N_CLASSES), f32) * s
    return p


_PARAM_ORDER = ["w_emb", "b_emb", "w_attn", "b_attn",
                "ln1_g", "ln1_b", "w1", "b1", "w2", "b2",
                "ln2_g", "ln2_b", "wfc_pad", "bfc_pad"]


def _supports_bf16_elementwise():
    """bf16 VALU exists on v6e/v7x but not v5e (or older). Host-side check."""
    try:
        kind = jax.devices()[0].device_kind.lower()
    except Exception:
        return False
    if "tpu" not in kind:
        return False
    return not any(t in kind for t in ("v2", "v3", "v4", "v5"))


def prepare_weights(params, *, ffn_bf16):
    """Fold / pad / cast PyTorch-layout params into the kernel layout.

    Call ONCE and reuse; re-running the fold einsums/casts per forward call
    would dominate small-batch latency.
    """
    f32, bf16 = jnp.float32, jnp.bfloat16
    eye = jnp.eye(D_MODEL, dtype=f32)
    # exact seq_len==1 fold of residual + out_proj(v_proj(.)) into one affine map
    w_attn = eye[None] + jnp.einsum("lij,ljk->lik", params["wv"], params["wo"])
    b_attn = jnp.einsum("lij,ljk->lik", params["bv"], params["wo"]) + params["bo"]
    # classifier: zero-pad 2 -> 8 output columns (aligned block, tiny writeback)
    wfc_pad = jnp.zeros((D_MODEL, N_CLASSES_PAD), f32).at[:, :N_CLASSES].set(params["wfc"])
    bfc_pad = jnp.zeros((1, N_CLASSES_PAD), f32).at[:, :N_CLASSES].set(params["bfc"])
    prep = {
        "w_emb": params["w_emb"].astype(bf16),
        "b_emb": params["b_emb"].astype(f32),
        "w_attn": w_attn.astype(bf16),
        "b_attn": b_attn.astype(f32),
        "ln1_g": params["ln1_g"].astype(f32),
        "ln1_b": params["ln1_b"].astype(f32),
        "w1": params["w1"].astype(bf16),
        "b1": params["b1"].astype(bf16 if ffn_bf16 else f32),
        "w2": params["w2"].astype(bf16),
        "b2": params["b2"].astype(f32),
        "ln2_g": params["ln2_g"].astype(f32),
        "ln2_b": params["ln2_b"].astype(f32),
        "wfc_pad": wfc_pad.astype(bf16),
        "bfc_pad": bfc_pad,  # f32 bias added after f32 accumulation
    }
    return [prep[k] for k in _PARAM_ORDER]


def _choose_tiling(B, tb_target=2048, min_grid=2):
    """Pad B to a multiple of 8 and pick a row tile ~B_pad/n (n grid steps).

    - tiny batches (< 256 rows) run as a single grid step;
    - larger batches get >= `min_grid` steps so v7x's two TensorCores both
      get work (grid axis is "parallel"); tiles are capped near tb_target so
      per-step pipeline overhead stays negligible;
    - the tile tracks B (instead of padding B up to a multiple of a fixed
      tile), so at most ~8*n wasted rows.
    """
    B_pad = _round_up(max(B, 1), 8)
    if B_pad < 256:
        return B_pad, B_pad
    n = max(min_grid, _cdiv(B_pad, tb_target))
    tb = _round_up(_cdiv(B_pad, n), 8)
    return tb, tb * n


def transformer_forward(x, prep_weights, *, ffn_bf16, tb_target=2048):
    B, d_in = x.shape
    tb, B_pad = _choose_tiling(B, tb_target)

    # Cast the input stream to bf16 before the pallas_call: halves the input
    # HBM read and the per-tile DMA; the MXU consumes bf16 anyway.
    x = x.astype(jnp.bfloat16)
    if B_pad != B:
        x = jnp.pad(x, ((0, B_pad - B), (0, 0)))

    def full_spec(arr):
        nd = arr.ndim
        return pl.BlockSpec(arr.shape, lambda i, _nd=nd: (0,) * _nd)

    in_specs = [pl.BlockSpec((tb, d_in), lambda i: (i, 0))]
    in_specs += [full_spec(w) for w in prep_weights]
    out_specs = pl.BlockSpec((tb, N_CLASSES_PAD), lambda i: (i, 0))

    kernel = functools.partial(transformer_kernel, ffn_bf16=ffn_bf16)
    out = pl.pallas_call(
        kernel,
        out_shape=jax.ShapeDtypeStruct((B_pad, N_CLASSES_PAD), jnp.float32),
        grid=(B_pad // tb,),
        in_specs=in_specs,
        out_specs=out_specs,
        compiler_params=pltpu.CompilerParams(
            dimension_semantics=("parallel",),
            vmem_limit_bytes=32 * 1024 * 1024),
    )(x, *prep_weights)
    return out[:B, :N_CLASSES]


def reference_forward(x, p):
    """Pure-JAX f32 reference mirroring the PyTorch (eval-mode) forward."""
    def ln(x, g, b):
        mean = jnp.mean(x, axis=-1, keepdims=True)
        var = jnp.mean((x - mean) ** 2, axis=-1, keepdims=True)
        return (x - mean) * jax.lax.rsqrt(var + EPS) * g + b

    h = x @ p["w_emb"] + p["b_emb"]
    for l in range(N_LAYERS):
        v = h @ p["wv"][l] + p["bv"][l]
        attn = v @ p["wo"][l] + p["bo"][l]
        h = ln(h + attn, p["ln1_g"][l], p["ln1_b"][l])
        f = jnp.maximum(h @ p["w1"][l] + p["b1"][l], 0.0)
        f = f @ p["w2"][l] + p["b2"][l]
        h = ln(h + f, p["ln2_g"][l], p["ln2_b"][l])
    return h @ p["wfc"] + p["bfc"]


if __name__ == "__main__":
    key = jax.random.PRNGKey(0)
    k_x1, k_x2, k_x3, k_p = jax.random.split(key, 4)

    input_dim = 32
    params = init_params(k_p, input_dim)

    ffn_bf16 = _supports_bf16_elementwise()
    # Fold / pad / cast weights ONCE; reused across all forward calls.
    weights = prepare_weights(params, ffn_bf16=ffn_bf16)

    # batch=8: single grid step; batch=20: non-multiple-of-8 padding path;
    # batch=300: multi-step grid + batch-tracking tile selection.
    for k_i, B in ((k_x1, 8), (k_x2, 20), (k_x3, 300)):
        x = jax.random.normal(k_i, (B, input_dim), jnp.float32)
        out = jax.block_until_ready(
            transformer_forward(x, weights, ffn_bf16=ffn_bf16))
        ref = reference_forward(x, params)
        assert out.shape == (B, N_CLASSES)
        # bf16 matmul operands / folded residual -> relaxed tolerance vs f32 ref
        assert jnp.allclose(out, ref, rtol=5e-2, atol=5e-2), \
            f"mismatch vs reference (batch={B})"

    print("KERNEL_OK")
</pallas_src>

<mosaic_0001>
module attributes {stable_mosaic.version = 11 : i64} {
  func.func @transformer_kernel(%arg0: i32, %arg1: memref<8x32xbf16, #tpu.memory_space<vmem>>, %arg2: memref<32x128xbf16, #tpu.memory_space<vmem>>, %arg3: memref<1x128xf32, #tpu.memory_space<vmem>>, %arg4: memref<3x128x128xbf16, #tpu.memory_space<vmem>>, %arg5: memref<3x1x128xf32, #tpu.memory_space<vmem>>, %arg6: memref<3x1x128xf32, #tpu.memory_space<vmem>>, %arg7: memref<3x1x128xf32, #tpu.memory_space<vmem>>, %arg8: memref<3x128x256xbf16, #tpu.memory_space<vmem>>, %arg9: memref<3x1x256xf32, #tpu.memory_space<vmem>>, %arg10: memref<3x256x128xbf16, #tpu.memory_space<vmem>>, %arg11: memref<3x1x128xf32, #tpu.memory_space<vmem>>, %arg12: memref<3x1x128xf32, #tpu.memory_space<vmem>>, %arg13: memref<3x1x128xf32, #tpu.memory_space<vmem>>, %arg14: memref<128x8xbf16, #tpu.memory_space<vmem>>, %arg15: memref<1x8xf32, #tpu.memory_space<vmem>>, %arg16: memref<8x8xf32, #tpu.memory_space<vmem>>) attributes {dimension_semantics = [#tpu.dimension_semantics<parallel>], iteration_bounds = array<i64: 1>, scalar_prefetch = 0 : i64, scratch_operands = 0 : i64, tpu.core_type = #tpu.core_type<tc>, window_params = [{transform_indices = @transform_0, window_bounds = array<i64: 8, 32>}, {pipeline_mode = #tpu.pipeline_mode<synchronous>, transform_indices = @transform_1, window_bounds = array<i64: 32, 128>}, {pipeline_mode = #tpu.pipeline_mode<synchronous>, transform_indices = @transform_2, window_bounds = array<i64: 1, 128>}, {pipeline_mode = #tpu.pipeline_mode<synchronous>, transform_indices = @transform_3, window_bounds = array<i64: 3, 128, 128>}, {pipeline_mode = #tpu.pipeline_mode<synchronous>, transform_indices = @transform_4, window_bounds = array<i64: 3, 1, 128>}, {pipeline_mode = #tpu.pipeline_mode<synchronous>, transform_indices = @transform_5, window_bounds = array<i64: 3, 1, 128>}, {pipeline_mode = #tpu.pipeline_mode<synchronous>, transform_indices = @transform_6, window_bounds = array<i64: 3, 1, 128>}, {pipeline_mode = #tpu.pipeline_mode<synchronous>, transform_indices = @transform_7, window_bounds = array<i64: 3, 128, 256>}, {pipeline_mode = #tpu.pipeline_mode<synchronous>, transform_indices = @transform_8, window_bounds = array<i64: 3, 1, 256>}, {pipeline_mode = #tpu.pipeline_mode<synchronous>, transform_indices = @transform_9, window_bounds = array<i64: 3, 256, 128>}, {pipeline_mode = #tpu.pipeline_mode<synchronous>, transform_indices = @transform_10, window_bounds = array<i64: 3, 1, 128>}, {pipeline_mode = #tpu.pipeline_mode<synchronous>, transform_indices = @transform_11, window_bounds = array<i64: 3, 1, 128>}, {pipeline_mode = #tpu.pipeline_mode<synchronous>, transform_indices = @transform_12, window_bounds = array<i64: 3, 1, 128>}, {pipeline_mode = #tpu.pipeline_mode<synchronous>, transform_indices = @transform_13, window_bounds = array<i64: 128, 8>}, {pipeline_mode = #tpu.pipeline_mode<synchronous>, transform_indices = @transform_14, window_bounds = array<i64: 1, 8>}, {transform_indices = @transform_15, window_bounds = array<i64: 8, 8>}]} {
    %c0 = arith.constant 0 : index
    %c0_0 = arith.constant 0 : index
    %0 = vector.load %arg1[%c0, %c0_0] : memref<8x32xbf16, #tpu.memory_space<vmem>>, vector<8x32xbf16>
    %c0_1 = arith.constant 0 : index
    %c0_2 = arith.constant 0 : index
    %1 = vector.load %arg2[%c0_1, %c0_2] : memref<32x128xbf16, #tpu.memory_space<vmem>>, vector<32x128xbf16>
    %cst = arith.constant dense<0.000000e+00> : vector<8x128xf32>
    %2 = tpu.matmul %0, %1, %cst {dimension_numbers = #tpu.dot_dimension_numbers<[1], [0], [0], [1], [0, 0, 1, 1], [], []>} : vector<8x32xbf16>, vector<32x128xbf16>, vector<8x128xf32> -> vector<8x128xf32>
    %c0_3 = arith.constant 0 : index
    %c0_4 = arith.constant 0 : index
    %3 = vector.load %arg3[%c0_3, %c0_4] : memref<1x128xf32, #tpu.memory_space<vmem>>, vector<1x128xf32>
    %4 = vector.broadcast %3 : vector<1x128xf32> to vector<8x128xf32>
    %5 = arith.addf %2, %4 : vector<8x128xf32>
    %6 = arith.truncf %5 : vector<8x128xf32> to vector<8x128xbf16>
    %c0_5 = arith.constant 0 : index
    %c0_6 = arith.constant 0 : index
    %c0_7 = arith.constant 0 : index
    %7 = vector.load %arg4[%c0_5, %c0_6, %c0_7] : memref<3x128x128xbf16, #tpu.memory_space<vmem>>, vector<1x128x128xbf16>
    %8 = vector.shape_cast %7 : vector<1x128x128xbf16> to vector<128x128xbf16>
    %cst_8 = arith.constant dense<0.000000e+00> : vector<8x128xf32>
    %9 = tpu.matmul %6, %8, %cst_8 {dimension_numbers = #tpu.dot_dimension_numbers<[1], [0], [0], [1], [0, 0, 1, 1], [], []>} : vector<8x128xbf16>, vector<128x128xbf16>, vector<8x128xf32> -> vector<8x128xf32>
    %c0_9 = arith.constant 0 : index
    %c0_10 = arith.constant 0 : index
    %c0_11 = arith.constant 0 : index
    %10 = vector.load %arg5[%c0_9, %c0_10, %c0_11] : memref<3x1x128xf32, #tpu.memory_space<vmem>>, vector<1x1x128xf32>
    %11 = vector.shape_cast %10 : vector<1x1x128xf32> to vector<1x128xf32>
    %12 = vector.broadcast %11 : vector<1x128xf32> to vector<8x128xf32>
    %13 = arith.addf %9, %12 : vector<8x128xf32>
    %c0_12 = arith.constant 0 : index
    %c0_13 = arith.constant 0 : index
    %c0_14 = arith.constant 0 : index
    %14 = vector.load %arg6[%c0_12, %c0_13, %c0_14] : memref<3x1x128xf32, #tpu.memory_space<vmem>>, vector<1x1x128xf32>
    %15 = vector.shape_cast %14 : vector<1x1x128xf32> to vector<1x128xf32>
    %c0_15 = arith.constant 0 : index
    %c0_16 = arith.constant 0 : index
    %c0_17 = arith.constant 0 : index
    %16 = vector.load %arg7[%c0_15, %c0_16, %c0_17] : memref<3x1x128xf32, #tpu.memory_space<vmem>>, vector<1x1x128xf32>
    %17 = vector.shape_cast %16 : vector<1x1x128xf32> to vector<1x128xf32>
    %cst_18 = arith.constant dense<0.000000e+00> : vector<8xf32>
    %18 = vector.multi_reduction <add>, %13, %cst_18 [1] : vector<8x128xf32> to vector<8xf32>
    %19 = vector.shape_cast %18 : vector<8xf32> to vector<8x1xf32>
    %cst_19 = arith.constant 1.280000e+02 : f32
    %20 = vector.broadcast %cst_19 : f32 to vector<8x1xf32>
    %21 = arith.divf %19, %20 : vector<8x1xf32>
    %22 = arith.mulf %13, %13 : vector<8x128xf32>
    %cst_20 = arith.constant dense<0.000000e+00> : vector<8xf32>
    %23 = vector.multi_reduction <add>, %22, %cst_20 [1] : vector<8x128xf32> to vector<8xf32>
    %24 = vector.shape_cast %23 : vector<8xf32> to vector<8x1xf32>
    %cst_21 = arith.constant 1.280000e+02 : f32
    %25 = vector.broadcast %cst_21 : f32 to vector<8x1xf32>
    %26 = arith.divf %24, %25 : vector<8x1xf32>
    %27 = arith.mulf %21, %21 : vector<8x1xf32>
    %28 = arith.subf %26, %27 : vector<8x1xf32>
    %cst_22 = arith.constant 0.000000e+00 : f32
    %29 = vector.broadcast %cst_22 : f32 to vector<8x1xf32>
    %30 = arith.maximumf %28, %29 : vector<8x1xf32>
    %cst_23 = arith.constant 9.99999974E-6 : f32
    %31 = vector.broadcast %cst_23 : f32 to vector<8x1xf32>
    %32 = arith.addf %30, %31 : vector<8x1xf32>
    %33 = math.rsqrt %32 : vector<8x1xf32>
    %34 = vector.broadcast %21 : vector<8x1xf32> to vector<8x128xf32>
    %35 = arith.subf %13, %34 : vector<8x128xf32>
    %36 = vector.broadcast %33 : vector<8x1xf32> to vector<8x128xf32>
    %37 = vector.broadcast %15 : vector<1x128xf32> to vector<8x128xf32>
    %38 = arith.mulf %36, %37 : vector<8x128xf32>
    %39 = arith.mulf %35, %38 : vector<8x128xf32>
    %40 = vector.broadcast %17 : vector<1x128xf32> to vector<8x128xf32>
    %41 = arith.addf %39, %40 : vector<8x128xf32>
    %42 = arith.truncf %41 : vector<8x128xf32> to vector<8x128xbf16>
    %c0_24 = arith.constant 0 : index
    %c0_25 = arith.constant 0 : index
    %c0_26 = arith.constant 0 : index
    %43 = vector.load %arg8[%c0_24, %c0_25, %c0_26] : memref<3x128x256xbf16, #tpu.memory_space<vmem>>, vector<1x128x256xbf16>
    %44 = vector.shape_cast %43 : vector<1x128x256xbf16> to vector<128x256xbf16>
    %cst_27 = arith.constant dense<0.000000e+00> : vector<8x256xf32>
    %45 = tpu.matmul %42, %44, %cst_27 {dimension_numbers = #tpu.dot_dimension_numbers<[1], [0], [0], [1], [0, 0, 1, 1], [], []>} : vector<8x128xbf16>, vector<128x256xbf16>, vector<8x256xf32> -> vector<8x256xf32>
    %c0_28 = arith.constant 0 : index
    %c0_29 = arith.constant 0 : index
    %c0_30 = arith.constant 0 : index
    %46 = vector.load %arg9[%c0_28, %c0_29, %c0_30] : memref<3x1x256xf32, #tpu.memory_space<vmem>>, vector<1x1x256xf32>
    %47 = vector.shape_cast %46 : vector<1x1x256xf32> to vector<1x256xf32>
    %48 = vector.broadcast %47 : vector<1x256xf32> to vector<8x256xf32>
    %49 = arith.addf %45, %48 : vector<8x256xf32>
    %cst_31 = arith.constant 0.000000e+00 : f32
    %50 = vector.broadcast %cst_31 : f32 to vector<8x256xf32>
    %51 = arith.maximumf %49, %50 : vector<8x256xf32>
    %52 = arith.truncf %51 : vector<8x256xf32> to vector<8x256xbf16>
    %c0_32 = arith.constant 0 : index
    %c0_33 = arith.constant 0 : index
    %c0_34 = arith.constant 0 : index
    %53 = vector.load %arg10[%c0_32, %c0_33, %c0_34] : memref<3x256x128xbf16, #tpu.memory_space<vmem>>, vector<1x256x128xbf16>
    %54 = vector.shape_cast %53 : vector<1x256x128xbf16> to vector<256x128xbf16>
    %cst_35 = arith.constant dense<0.000000e+00> : vector<8x128xf32>
    %55 = tpu.matmul %52, %54, %cst_35 {dimension_numbers = #tpu.dot_dimension_numbers<[1], [0], [0], [1], [0, 0, 1, 1], [], []>} : vector<8x256xbf16>, vector<256x128xbf16>, vector<8x128xf32> -> vector<8x128xf32>
    %c0_36 = arith.constant 0 : index
    %c0_37 = arith.constant 0 : index
    %c0_38 = arith.constant 0 : index
    %56 = vector.load %arg11[%c0_36, %c0_37, %c0_38] : memref<3x1x128xf32, #tpu.memory_space<vmem>>, vector<1x1x128xf32>
    %57 = vector.shape_cast %56 : vector<1x1x128xf32> to vector<1x128xf32>
    %58 = vector.broadcast %57 : vector<1x128xf32> to vector<8x128xf32>
    %59 = arith.addf %55, %58 : vector<8x128xf32>
    %60 = arith.addf %41, %59 : vector<8x128xf32>
    %c0_39 = arith.constant 0 : index
    %c0_40 = arith.constant 0 : index
    %c0_41 = arith.constant 0 : index
    %61 = vector.load %arg12[%c0_39, %c0_40, %c0_41] : memref<3x1x128xf32, #tpu.memory_space<vmem>>, vector<1x1x128xf32>
    %62 = vector.shape_cast %61 : vector<1x1x128xf32> to vector<1x128xf32>
    %c0_42 = arith.constant 0 : index
    %c0_43 = arith.constant 0 : index
    %c0_44 = arith.constant 0 : index
    %63 = vector.load %arg13[%c0_42, %c0_43, %c0_44] : memref<3x1x128xf32, #tpu.memory_space<vmem>>, vector<1x1x128xf32>
    %64 = vector.shape_cast %63 : vector<1x1x128xf32> to vector<1x128xf32>
    %cst_45 = arith.constant dense<0.000000e+00> : vector<8xf32>
    %65 = vector.multi_reduction <add>, %60, %cst_45 [1] : vector<8x128xf32> to vector<8xf32>
    %66 = vector.shape_cast %65 : vector<8xf32> to vector<8x1xf32>
    %cst_46 = arith.constant 1.280000e+02 : f32
    %67 = vector.broadcast %cst_46 : f32 to vector<8x1xf32>
    %68 = arith.divf %66, %67 : vector<8x1xf32>
    %69 = arith.mulf %60, %60 : vector<8x128xf32>
    %cst_47 = arith.constant dense<0.000000e+00> : vector<8xf32>
    %70 = vector.multi_reduction <add>, %69, %cst_47 [1] : vector<8x128xf32> to vector<8xf32>
    %71 = vector.shape_cast %70 : vector<8xf32> to vector<8x1xf32>
    %cst_48 = arith.constant 1.280000e+02 : f32
    %72 = vector.broadcast %cst_48 : f32 to vector<8x1xf32>
    %73 = arith.divf %71, %72 : vector<8x1xf32>
    %74 = arith.mulf %68, %68 : vector<8x1xf32>
    %75 = arith.subf %73, %74 : vector<8x1xf32>
    %cst_49 = arith.constant 0.000000e+00 : f32
    %76 = vector.broadcast %cst_49 : f32 to vector<8x1xf32>
    %77 = arith.maximumf %75, %76 : vector<8x1xf32>
    %cst_50 = arith.constant 9.99999974E-6 : f32
    %78 = vector.broadcast %cst_50 : f32 to vector<8x1xf32>
    %79 = arith.addf %77, %78 : vector<8x1xf32>
    %80 = math.rsqrt %79 : vector<8x1xf32>
    %81 = vector.broadcast %68 : vector<8x1xf32> to vector<8x128xf32>
    %82 = arith.subf %60, %81 : vector<8x128xf32>
    %83 = vector.broadcast %80 : vector<8x1xf32> to vector<8x128xf32>
    %84 = vector.broadcast %62 : vector<1x128xf32> to vector<8x128xf32>
    %85 = arith.mulf %83, %84 : vector<8x128xf32>
    %86 = arith.mulf %82, %85 : vector<8x128xf32>
    %87 = vector.broadcast %64 : vector<1x128xf32> to vector<8x128xf32>
    %88 = arith.addf %86, %87 : vector<8x128xf32>
    %89 = arith.truncf %88 : vector<8x128xf32> to vector<8x128xbf16>
    %c1 = arith.constant 1 : index
    %c0_51 = arith.constant 0 : index
    %c0_52 = arith.constant 0 : index
    %90 = vector.load %arg4[%c1, %c0_51, %c0_52] : memref<3x128x128xbf16, #tpu.memory_space<vmem>>, vector<1x128x128xbf16>
    %91 = vector.shape_cast %90 : vector<1x128x128xbf16> to vector<128x128xbf16>
    %cst_53 = arith.constant dense<0.000000e+00> : vector<8x128xf32>
    %92 = tpu.matmul %89, %91, %cst_53 {dimension_numbers = #tpu.dot_dimension_numbers<[1], [0], [0], [1], [0, 0, 1, 1], [], []>} : vector<8x128xbf16>, vector<128x128xbf16>, vector<8x128xf32> -> vector<8x128xf32>
    %c1_54 = arith.constant 1 : index
    %c0_55 = arith.constant 0 : index
    %c0_56 = arith.constant 0 : index
    %93 = vector.load %arg5[%c1_54, %c0_55, %c0_56] : memref<3x1x128xf32, #tpu.memory_space<vmem>>, vector<1x1x128xf32>
    %94 = vector.shape_cast %93 : vector<1x1x128xf32> to vector<1x128xf32>
    %95 = vector.broadcast %94 : vector<1x128xf32> to vector<8x128xf32>
    %96 = arith.addf %92, %95 : vector<8x128xf32>
    %c1_57 = arith.constant 1 : index
    %c0_58 = arith.constant 0 : index
    %c0_59 = arith.constant 0 : index
    %97 = vector.load %arg6[%c1_57, %c0_58, %c0_59] : memref<3x1x128xf32, #tpu.memory_space<vmem>>, vector<1x1x128xf32>
    %98 = vector.shape_cast %97 : vector<1x1x128xf32> to vector<1x128xf32>
    %c1_60 = arith.constant 1 : index
    %c0_61 = arith.constant 0 : index
    %c0_62 = arith.constant 0 : index
    %99 = vector.load %arg7[%c1_60, %c0_61, %c0_62] : memref<3x1x128xf32, #tpu.memory_space<vmem>>, vector<1x1x128xf32>
    %100 = vector.shape_cast %99 : vector<1x1x128xf32> to vector<1x128xf32>
    %cst_63 = arith.constant dense<0.000000e+00> : vector<8xf32>
    %101 = vector.multi_reduction <add>, %96, %cst_63 [1] : vector<8x128xf32> to vector<8xf32>
    %102 = vector.shape_cast %101 : vector<8xf32> to vector<8x1xf32>
    %cst_64 = arith.constant 1.280000e+02 : f32
    %103 = vector.broadcast %cst_64 : f32 to vector<8x1xf32>
    %104 = arith.divf %102, %103 : vector<8x1xf32>
    %105 = arith.mulf %96, %96 : vector<8x128xf32>
    %cst_65 = arith.constant dense<0.000000e+00> : vector<8xf32>
    %106 = vector.multi_reduction <add>, %105, %cst_65 [1] : vector<8x128xf32> to vector<8xf32>
    %107 = vector.shape_cast %106 : vector<8xf32> to vector<8x1xf32>
    %cst_66 = arith.constant 1.280000e+02 : f32
    %108 = vector.broadcast %cst_66 : f32 to vector<8x1xf32>
    %109 = arith.divf %107, %108 : vector<8x1xf32>
    %110 = arith.mulf %104, %104 : vector<8x1xf32>
    %111 = arith.subf %109, %110 : vector<8x1xf32>
    %cst_67 = arith.constant 0.000000e+00 : f32
    %112 = vector.broadcast %cst_67 : f32 to vector<8x1xf32>
    %113 = arith.maximumf %111, %112 : vector<8x1xf32>
    %cst_68 = arith.constant 9.99999974E-6 : f32
    %114 = vector.broadcast %cst_68 : f32 to vector<8x1xf32>
    %115 = arith.addf %113, %114 : vector<8x1xf32>
    %116 = math.rsqrt %115 : vector<8x1xf32>
    %117 = vector.broadcast %104 : vector<8x1xf32> to vector<8x128xf32>
    %118 = arith.subf %96, %117 : vector<8x128xf32>
    %119 = vector.broadcast %116 : vector<8x1xf32> to vector<8x128xf32>
    %120 = vector.broadcast %98 : vector<1x128xf32> to vector<8x128xf32>
    %121 = arith.mulf %119, %120 : vector<8x128xf32>
    %122 = arith.mulf %118, %121 : vector<8x128xf32>
    %123 = vector.broadcast %100 : vector<1x128xf32> to vector<8x128xf32>
    %124 = arith.addf %122, %123 : vector<8x128xf32>
    %125 = arith.truncf %124 : vector<8x128xf32> to vector<8x128xbf16>
    %c1_69 = arith.constant 1 : index
    %c0_70 = arith.constant 0 : index
    %c0_71 = arith.constant 0 : index
    %126 = vector.load %arg8[%c1_69, %c0_70, %c0_71] : memref<3x128x256xbf16, #tpu.memory_space<vmem>>, vector<1x128x256xbf16>
    %127 = vector.shape_cast %126 : vector<1x128x256xbf16> to vector<128x256xbf16>
    %cst_72 = arith.constant dense<0.000000e+00> : vector<8x256xf32>
    %128 = tpu.matmul %125, %127, %cst_72 {dimension_numbers = #tpu.dot_dimension_numbers<[1], [0], [0], [1], [0, 0, 1, 1], [], []>} : vector<8x128xbf16>, vector<128x256xbf16>, vector<8x256xf32> -> vector<8x256xf32>
    %c1_73 = arith.constant 1 : index
    %c0_74 = arith.constant 0 : index
    %c0_75 = arith.constant 0 : index
    %129 = vector.load %arg9[%c1_73, %c0_74, %c0_75] : memref<3x1x256xf32, #tpu.memory_space<vmem>>, vector<1x1x256xf32>
    %130 = vector.shape_cast %129 : vector<1x1x256xf32> to vector<1x256xf32>
    %131 = vector.broadcast %130 : vector<1x256xf32> to vector<8x256xf32>
    %132 = arith.addf %128, %131 : vector<8x256xf32>
    %cst_76 = arith.constant 0.000000e+00 : f32
    %133 = vector.broadcast %cst_76 : f32 to vector<8x256xf32>
    %134 = arith.maximumf %132, %133 : vector<8x256xf32>
    %135 = arith.truncf %134 : vector<8x256xf32> to vector<8x256xbf16>
    %c1_77 = arith.constant 1 : index
    %c0_78 = arith.constant 0 : index
    %c0_79 = arith.constant 0 : index
    %136 = vector.load %arg10[%c1_77, %c0_78, %c0_79] : memref<3x256x128xbf16, #tpu.memory_space<vmem>>, vector<1x256x128xbf16>
    %137 = vector.shape_cast %136 : vector<1x256x128xbf16> to vector<256x128xbf16>
    %cst_80 = arith.constant dense<0.000000e+00> : vector<8x128xf32>
    %138 = tpu.matmul %135, %137, %cst_80 {dimension_numbers = #tpu.dot_dimension_numbers<[1], [0], [0], [1], [0, 0, 1, 1], [], []>} : vector<8x256xbf16>, vector<256x128xbf16>, vector<8x128xf32> -> vector<8x128xf32>
    %c1_81 = arith.constant 1 : index
    %c0_82 = arith.constant 0 : index
    %c0_83 = arith.constant 0 : index
    %139 = vector.load %arg11[%c1_81, %c0_82, %c0_83] : memref<3x1x128xf32, #tpu.memory_space<vmem>>, vector<1x1x128xf32>
    %140 = vector.shape_cast %139 : vector<1x1x128xf32> to vector<1x128xf32>
    %141 = vector.broadcast %140 : vector<1x128xf32> to vector<8x128xf32>
    %142 = arith.addf %138, %141 : vector<8x128xf32>
    %143 = arith.addf %124, %142 : vector<8x128xf32>
    %c1_84 = arith.constant 1 : index
    %c0_85 = arith.constant 0 : index
    %c0_86 = arith.constant 0 : index
    %144 = vector.load %arg12[%c1_84, %c0_85, %c0_86] : memref<3x1x128xf32, #tpu.memory_space<vmem>>, vector<1x1x128xf32>
    %145 = vector.shape_cast %144 : vector<1x1x128xf32> to vector<1x128xf32>
    %c1_87 = arith.constant 1 : index
    %c0_88 = arith.constant 0 : index
    %c0_89 = arith.constant 0 : index
    %146 = vector.load %arg13[%c1_87, %c0_88, %c0_89] : memref<3x1x128xf32, #tpu.memory_space<vmem>>, vector<1x1x128xf32>
    %147 = vector.shape_cast %146 : vector<1x1x128xf32> to vector<1x128xf32>
    %cst_90 = arith.constant dense<0.000000e+00> : vector<8xf32>
    %148 = vector.multi_reduction <add>, %143, %cst_90 [1] : vector<8x128xf32> to vector<8xf32>
    %149 = vector.shape_cast %148 : vector<8xf32> to vector<8x1xf32>
    %cst_91 = arith.constant 1.280000e+02 : f32
    %150 = vector.broadcast %cst_91 : f32 to vector<8x1xf32>
    %151 = arith.divf %149, %150 : vector<8x1xf32>
    %152 = arith.mulf %143, %143 : vector<8x128xf32>
    %cst_92 = arith.constant dense<0.000000e+00> : vector<8xf32>
    %153 = vector.multi_reduction <add>, %152, %cst_92 [1] : vector<8x128xf32> to vector<8xf32>
    %154 = vector.shape_cast %153 : vector<8xf32> to vector<8x1xf32>
    %cst_93 = arith.constant 1.280000e+02 : f32
    %155 = vector.broadcast %cst_93 : f32 to vector<8x1xf32>
    %156 = arith.divf %154, %155 : vector<8x1xf32>
    %157 = arith.mulf %151, %151 : vector<8x1xf32>
    %158 = arith.subf %156, %157 : vector<8x1xf32>
    %cst_94 = arith.constant 0.000000e+00 : f32
    %159 = vector.broadcast %cst_94 : f32 to vector<8x1xf32>
    %160 = arith.maximumf %158, %159 : vector<8x1xf32>
    %cst_95 = arith.constant 9.99999974E-6 : f32
    %161 = vector.broadcast %cst_95 : f32 to vector<8x1xf32>
    %162 = arith.addf %160, %161 : vector<8x1xf32>
    %163 = math.rsqrt %162 : vector<8x1xf32>
    %164 = vector.broadcast %151 : vector<8x1xf32> to vector<8x128xf32>
    %165 = arith.subf %143, %164 : vector<8x128xf32>
    %166 = vector.broadcast %163 : vector<8x1xf32> to vector<8x128xf32>
    %167 = vector.broadcast %145 : vector<1x128xf32> to vector<8x128xf32>
    %168 = arith.mulf %166, %167 : vector<8x128xf32>
    %169 = arith.mulf %165, %168 : vector<8x128xf32>
    %170 = vector.broadcast %147 : vector<1x128xf32> to vector<8x128xf32>
    %171 = arith.addf %169, %170 : vector<8x128xf32>
    %172 = arith.truncf %171 : vector<8x128xf32> to vector<8x128xbf16>
    %c2 = arith.constant 2 : index
    %c0_96 = arith.constant 0 : index
    %c0_97 = arith.constant 0 : index
    %173 = vector.load %arg4[%c2, %c0_96, %c0_97] : memref<3x128x128xbf16, #tpu.memory_space<vmem>>, vector<1x128x128xbf16>
    %174 = vector.shape_cast %173 : vector<1x128x128xbf16> to vector<128x128xbf16>
    %cst_98 = arith.constant dense<0.000000e+00> : vector<8x128xf32>
    %175 = tpu.matmul %172, %174, %cst_98 {dimension_numbers = #tpu.dot_dimension_numbers<[1], [0], [0], [1], [0, 0, 1, 1], [], []>} : vector<8x128xbf16>, vector<128x128xbf16>, vector<8x128xf32> -> vector<8x128xf32>
    %c2_99 = arith.constant 2 : index
    %c0_100 = arith.constant 0 : index
    %c0_101 = arith.constant 0 : index
    %176 = vector.load %arg5[%c2_99, %c0_100, %c0_101] : memref<3x1x128xf32, #tpu.memory_space<vmem>>, vector<1x1x128xf32>
    %177 = vector.shape_cast %176 : vector<1x1x128xf32> to vector<1x128xf32>
    %178 = vector.broadcast %177 : vector<1x128xf32> to vector<8x128xf32>
    %179 = arith.addf %175, %178 : vector<8x128xf32>
    %c2_102 = arith.constant 2 : index
    %c0_103 = arith.constant 0 : index
    %c0_104 = arith.constant 0 : index
    %180 = vector.load %arg6[%c2_102, %c0_103, %c0_104] : memref<3x1x128xf32, #tpu.memory_space<vmem>>, vector<1x1x128xf32>
    %181 = vector.shape_cast %180 : vector<1x1x128xf32> to vector<1x128xf32>
    %c2_105 = arith.constant 2 : index
    %c0_106 = arith.constant 0 : index
    %c0_107 = arith.constant 0 : index
    %182 = vector.load %arg7[%c2_105, %c0_106, %c0_107] : memref<3x1x128xf32, #tpu.memory_space<vmem>>, vector<1x1x128xf32>
    %183 = vector.shape_cast %182 : vector<1x1x128xf32> to vector<1x128xf32>
    %cst_108 = arith.constant dense<0.000000e+00> : vector<8xf32>
    %184 = vector.multi_reduction <add>, %179, %cst_108 [1] : vector<8x128xf32> to vector<8xf32>
    %185 = vector.shape_cast %184 : vector<8xf32> to vector<8x1xf32>
    %cst_109 = arith.constant 1.280000e+02 : f32
    %186 = vector.broadcast %cst_109 : f32 to vector<8x1xf32>
    %187 = arith.divf %185, %186 : vector<8x1xf32>
    %188 = arith.mulf %179, %179 : vector<8x128xf32>
    %cst_110 = arith.constant dense<0.000000e+00> : vector<8xf32>
    %189 = vector.multi_reduction <add>, %188, %cst_110 [1] : vector<8x128xf32> to vector<8xf32>
    %190 = vector.shape_cast %189 : vector<8xf32> to vector<8x1xf32>
    %cst_111 = arith.constant 1.280000e+02 : f32
    %191 = vector.broadcast %cst_111 : f32 to vector<8x1xf32>
    %192 = arith.divf %190, %191 : vector<8x1xf32>
    %193 = arith.mulf %187, %187 : vector<8x1xf32>
    %194 = arith.subf %192, %193 : vector<8x1xf32>
    %cst_112 = arith.constant 0.000000e+00 : f32
    %195 = vector.broadcast %cst_112 : f32 to vector<8x1xf32>
    %196 = arith.maximumf %194, %195 : vector<8x1xf32>
    %cst_113 = arith.constant 9.99999974E-6 : f32
    %197 = vector.broadcast %cst_113 : f32 to vector<8x1xf32>
    %198 = arith.addf %196, %197 : vector<8x1xf32>
    %199 = math.rsqrt %198 : vector<8x1xf32>
    %200 = vector.broadcast %187 : vector<8x1xf32> to vector<8x128xf32>
    %201 = arith.subf %179, %200 : vector<8x128xf32>
    %202 = vector.broadcast %199 : vector<8x1xf32> to vector<8x128xf32>
    %203 = vector.broadcast %181 : vector<1x128xf32> to vector<8x128xf32>
    %204 = arith.mulf %202, %203 : vector<8x128xf32>
    %205 = arith.mulf %201, %204 : vector<8x128xf32>
    %206 = vector.broadcast %183 : vector<1x128xf32> to vector<8x128xf32>
    %207 = arith.addf %205, %206 : vector<8x128xf32>
    %208 = arith.truncf %207 : vector<8x128xf32> to vector<8x128xbf16>
    %c2_114 = arith.constant 2 : index
    %c0_115 = arith.constant 0 : index
    %c0_116 = arith.constant 0 : index
    %209 = vector.load %arg8[%c2_114, %c0_115, %c0_116] : memref<3x128x256xbf16, #tpu.memory_space<vmem>>, vector<1x128x256xbf16>
    %210 = vector.shape_cast %209 : vector<1x128x256xbf16> to vector<128x256xbf16>
    %cst_117 = arith.constant dense<0.000000e+00> : vector<8x256xf32>
    %211 = tpu.matmul %208, %210, %cst_117 {dimension_numbers = #tpu.dot_dimension_numbers<[1], [0], [0], [1], [0, 0, 1, 1], [], []>} : vector<8x128xbf16>, vector<128x256xbf16>, vector<8x256xf32> -> vector<8x256xf32>
    %c2_118 = arith.constant 2 : index
    %c0_119 = arith.constant 0 : index
    %c0_120 = arith.constant 0 : index
    %212 = vector.load %arg9[%c2_118, %c0_119, %c0_120] : memref<3x1x256xf32, #tpu.memory_space<vmem>>, vector<1x1x256xf32>
    %213 = vector.shape_cast %212 : vector<1x1x256xf32> to vector<1x256xf32>
    %214 = vector.broadcast %213 : vector<1x256xf32> to vector<8x256xf32>
    %215 = arith.addf %211, %214 : vector<8x256xf32>
    %cst_121 = arith.constant 0.000000e+00 : f32
    %216 = vector.broadcast %cst_121 : f32 to vector<8x256xf32>
    %217 = arith.maximumf %215, %216 : vector<8x256xf32>
    %218 = arith.truncf %217 : vector<8x256xf32> to vector<8x256xbf16>
    %c2_122 = arith.constant 2 : index
    %c0_123 = arith.constant 0 : index
    %c0_124 = arith.constant 0 : index
    %219 = vector.load %arg10[%c2_122, %c0_123, %c0_124] : memref<3x256x128xbf16, #tpu.memory_space<vmem>>, vector<1x256x128xbf16>
    %220 = vector.shape_cast %219 : vector<1x256x128xbf16> to vector<256x128xbf16>
    %cst_125 = arith.constant dense<0.000000e+00> : vector<8x128xf32>
    %221 = tpu.matmul %218, %220, %cst_125 {dimension_numbers = #tpu.dot_dimension_numbers<[1], [0], [0], [1], [0, 0, 1, 1], [], []>} : vector<8x256xbf16>, vector<256x128xbf16>, vector<8x128xf32> -> vector<8x128xf32>
    %c2_126 = arith.constant 2 : index
    %c0_127 = arith.constant 0 : index
    %c0_128 = arith.constant 0 : index
    %222 = vector.load %arg11[%c2_126, %c0_127, %c0_128] : memref<3x1x128xf32, #tpu.memory_space<vmem>>, vector<1x1x128xf32>
    %223 = vector.shape_cast %222 : vector<1x1x128xf32> to vector<1x128xf32>
    %224 = vector.broadcast %223 : vector<1x128xf32> to vector<8x128xf32>
    %225 = arith.addf %221, %224 : vector<8x128xf32>
    %226 = arith.addf %207, %225 : vector<8x128xf32>
    %c2_129 = arith.constant 2 : index
    %c0_130 = arith.constant 0 : index
    %c0_131 = arith.constant 0 : index
    %227 = vector.load %arg12[%c2_129, %c0_130, %c0_131] : memref<3x1x128xf32, #tpu.memory_space<vmem>>, vector<1x1x128xf32>
    %228 = vector.shape_cast %227 : vector<1x1x128xf32> to vector<1x128xf32>
    %c2_132 = arith.constant 2 : index
    %c0_133 = arith.constant 0 : index
    %c0_134 = arith.constant 0 : index
    %229 = vector.load %arg13[%c2_132, %c0_133, %c0_134] : memref<3x1x128xf32, #tpu.memory_space<vmem>>, vector<1x1x128xf32>
    %230 = vector.shape_cast %229 : vector<1x1x128xf32> to vector<1x128xf32>
    %cst_135 = arith.constant dense<0.000000e+00> : vector<8xf32>
    %231 = vector.multi_reduction <add>, %226, %cst_135 [1] : vector<8x128xf32> to vector<8xf32>
    %232 = vector.shape_cast %231 : vector<8xf32> to vector<8x1xf32>
    %cst_136 = arith.constant 1.280000e+02 : f32
    %233 = vector.broadcast %cst_136 : f32 to vector<8x1xf32>
    %234 = arith.divf %232, %233 : vector<8x1xf32>
    %235 = arith.mulf %226, %226 : vector<8x128xf32>
    %cst_137 = arith.constant dense<0.000000e+00> : vector<8xf32>
    %236 = vector.multi_reduction <add>, %235, %cst_137 [1] : vector<8x128xf32> to vector<8xf32>
    %237 = vector.shape_cast %236 : vector<8xf32> to vector<8x1xf32>
    %cst_138 = arith.constant 1.280000e+02 : f32
    %238 = vector.broadcast %cst_138 : f32 to vector<8x1xf32>
    %239 = arith.divf %237, %238 : vector<8x1xf32>
    %240 = arith.mulf %234, %234 : vector<8x1xf32>
    %241 = arith.subf %239, %240 : vector<8x1xf32>
    %cst_139 = arith.constant 0.000000e+00 : f32
    %242 = vector.broadcast %cst_139 : f32 to vector<8x1xf32>
    %243 = arith.maximumf %241, %242 : vector<8x1xf32>
    %cst_140 = arith.constant 9.99999974E-6 : f32
    %244 = vector.broadcast %cst_140 : f32 to vector<8x1xf32>
    %245 = arith.addf %243, %244 : vector<8x1xf32>
    %246 = math.rsqrt %245 : vector<8x1xf32>
    %247 = vector.broadcast %234 : vector<8x1xf32> to vector<8x128xf32>
    %248 = arith.subf %226, %247 : vector<8x128xf32>
    %249 = vector.broadcast %246 : vector<8x1xf32> to vector<8x128xf32>
    %250 = vector.broadcast %228 : vector<1x128xf32> to vector<8x128xf32>
    %251 = arith.mulf %249, %250 : vector<8x128xf32>
    %252 = arith.mulf %248, %251 : vector<8x128xf32>
    %253 = vector.broadcast %230 : vector<1x128xf32> to vector<8x128xf32>
    %254 = arith.addf %252, %253 : vector<8x128xf32>
    %255 = arith.truncf %254 : vector<8x128xf32> to vector<8x128xbf16>
    %c0_141 = arith.constant 0 : index
    %c0_142 = arith.constant 0 : index
    %256 = vector.load %arg14[%c0_141, %c0_142] : memref<128x8xbf16, #tpu.memory_space<vmem>>, vector<128x8xbf16>
    %cst_143 = arith.constant dense<0.000000e+00> : vector<8x8xf32>
    %257 = tpu.matmul %255, %256, %cst_143 {dimension_numbers = #tpu.dot_dimension_numbers<[1], [0], [0], [1], [0, 0, 1, 1], [], []>} : vector<8x128xbf16>, vector<128x8xbf16>, vector<8x8xf32> -> vector<8x8xf32>
    %c0_144 = arith.constant 0 : index
    %c0_145 = arith.constant 0 : index
    %258 = vector.load %arg15[%c0_144, %c0_145] : memref<1x8xf32, #tpu.memory_space<vmem>>, vector<1x8xf32>
    %259 = vector.broadcast %258 : vector<1x8xf32> to vector<8x8xf32>
    %260 = arith.addf %257, %259 : vector<8x8xf32>
    %c0_146 = arith.constant 0 : index
    %c0_147 = arith.constant 0 : index
    %261 = vector.load %arg16[%c0_146, %c0_147] : memref<8x8xf32, #tpu.memory_space<vmem>>, vector<8x8xf32>
    tpu.vector_store %arg16[%c0_146, %c0_147], %260 {strides = array<i32>} : memref<8x8xf32, #tpu.memory_space<vmem>>, vector<8x8xf32>,
    return
  }
  func.func @transform_0(%arg0: i32) -> (i32, i32) {
    %c0_i32 = arith.constant 0 : i32
    %c0_i32_0 = arith.constant 0 : i32
    return %arg0, %c0_i32 : i32, i32
  }
  func.func @transform_1(%arg0: i32) -> (i32, i32) {
    %c0_i32 = arith.constant 0 : i32
    %c0_i32_0 = arith.constant 0 : i32
    %c0_i32_1 = arith.constant 0 : i32
    return %c0_i32, %c0_i32_0 : i32, i32
  }
  func.func @transform_2(%arg0: i32) -> (i32, i32) {
    %c0_i32 = arith.constant 0 : i32
    %c0_i32_0 = arith.constant 0 : i32
    %c0_i32_1 = arith.constant 0 : i32
    return %c0_i32, %c0_i32_0 : i32, i32
  }
  func.func @transform_3(%arg0: i32) -> (i32, i32, i32) {
    %c0_i32 = arith.constant 0 : i32
    %c0_i32_0 = arith.constant 0 : i32
    %c0_i32_1 = arith.constant 0 : i32
    %c0_i32_2 = arith.constant 0 : i32
    return %c0_i32, %c0_i32_0, %c0_i32_1 : i32, i32, i32
  }
  func.func @transform_4(%arg0: i32) -> (i32, i32, i32) {
    %c0_i32 = arith.constant 0 : i32
    %c0_i32_0 = arith.constant 0 : i32
    %c0_i32_1 = arith.constant 0 : i32
    %c0_i32_2 = arith.constant 0 : i32
    return %c0_i32, %c0_i32_0, %c0_i32_1 : i32, i32, i32
  }
  func.func @transform_5(%arg0: i32) -> (i32, i32, i32) {
    %c0_i32 = arith.constant 0 : i32
    %c0_i32_0 = arith.constant 0 : i32
    %c0_i32_1 = arith.constant 0 : i32
    %c0_i32_2 = arith.constant 0 : i32
    return %c0_i32, %c0_i32_0, %c0_i32_1 : i32, i32, i32
  }
  func.func @transform_6(%arg0: i32) -> (i32, i32, i32) {
    %c0_i32 = arith.constant 0 : i32
    %c0_i32_0 = arith.constant 0 : i32
    %c0_i32_1 = arith.constant 0 : i32
    %c0_i32_2 = arith.constant 0 : i32
    return %c0_i32, %c0_i32_0, %c0_i32_1 : i32, i32, i32
  }
  func.func @transform_7(%arg0: i32) -> (i32, i32, i32) {
    %c0_i32 = arith.constant 0 : i32
    %c0_i32_0 = arith.constant 0 : i32
    %c0_i32_1 = arith.constant 0 : i32
    %c0_i32_2 = arith.constant 0 : i32
    return %c0_i32, %c0_i32_0, %c0_i32_1 : i32, i32, i32
  }
  func.func @transform_8(%arg0: i32) -> (i32, i32, i32) {
    %c0_i32 = arith.constant 0 : i32
    %c0_i32_0 = arith.constant 0 : i32
    %c0_i32_1 = arith.constant 0 : i32
    %c0_i32_2 = arith.constant 0 : i32
    return %c0_i32, %c0_i32_0, %c0_i32_1 : i32, i32, i32
  }
  func.func @transform_9(%arg0: i32) -> (i32, i32, i32) {
    %c0_i32 = arith.constant 0 : i32
    %c0_i32_0 = arith.constant 0 : i32
    %c0_i32_1 = arith.constant 0 : i32
    %c0_i32_2 = arith.constant 0 : i32
    return %c0_i32, %c0_i32_0, %c0_i32_1 : i32, i32, i32
  }
  func.func @transform_10(%arg0: i32) -> (i32, i32, i32) {
    %c0_i32 = arith.constant 0 : i32
    %c0_i32_0 = arith.constant 0 : i32
    %c0_i32_1 = arith.constant 0 : i32
    %c0_i32_2 = arith.constant 0 : i32
    return %c0_i32, %c0_i32_0, %c0_i32_1 : i32, i32, i32
  }
  func.func @transform_11(%arg0: i32) -> (i32, i32, i32) {
    %c0_i32 = arith.constant 0 : i32
    %c0_i32_0 = arith.constant 0 : i32
    %c0_i32_1 = arith.constant 0 : i32
    %c0_i32_2 = arith.constant 0 : i32
    return %c0_i32, %c0_i32_0, %c0_i32_1 : i32, i32, i32
  }
  func.func @transform_12(%arg0: i32) -> (i32, i32, i32) {
    %c0_i32 = arith.constant 0 : i32
    %c0_i32_0 = arith.constant 0 : i32
    %c0_i32_1 = arith.constant 0 : i32
    %c0_i32_2 = arith.constant 0 : i32
    return %c0_i32, %c0_i32_0, %c0_i32_1 : i32, i32, i32
  }
  func.func @transform_13(%arg0: i32) -> (i32, i32) {
    %c0_i32 = arith.constant 0 : i32
    %c0_i32_0 = arith.constant 0 : i32
    %c0_i32_1 = arith.constant 0 : i32
    return %c0_i32, %c0_i32_0 : i32, i32
  }
  func.func @transform_14(%arg0: i32) -> (i32, i32) {
    %c0_i32 = arith.constant 0 : i32
    %c0_i32_0 = arith.constant 0 : i32
    %c0_i32_1 = arith.constant 0 : i32
    return %c0_i32, %c0_i32_0 : i32, i32
  }
  func.func @transform_15(%arg0: i32) -> (i32, i32) {
    %c0_i32 = arith.constant 0 : i32
    %c0_i32_0 = arith.constant 0 : i32
    return %arg0, %c0_i32 : i32, i32
  }
}

</mosaic_0001>

<llo_original>
// kernel: tpu_custom_call.1
$region0: #{tpu_custom_call.1}
  #allocation0 [shape = 'u32[]', space=smem, size = 0x4, offset = 0x4, fixed_abs, tag = 'smem constant byte address 0x4 - core index']
  #allocation1 [shape = 'u32[144,128]{1,0:T(1,128)}', space=vmem, size = 0x12000, scoped, tag = 'internal scratch']
  %s0 = inlined_call_operand.vmem [shape: bf16[8,32], index: 0, kind: input, shape index: {}]
  %s1 = inlined_call_operand.vmem [shape: bf16[32,128], index: 1, kind: input, shape index: {}]
  %s2 = inlined_call_operand.vmem [shape: f32[1,128], index: 2, kind: input, shape index: {}]
  %s3 = inlined_call_operand.hbm [shape: bf16[3,128,128], index: 3, kind: input, shape index: {}]
  %s4 = inlined_call_operand.vmem [shape: f32[3,1,128], index: 4, kind: input, shape index: {}]
  %s5 = inlined_call_operand.vmem [shape: f32[3,1,128], index: 5, kind: input, shape index: {}]
  %s6 = inlined_call_operand.vmem [shape: f32[3,1,128], index: 6, kind: input, shape index: {}]
  %s7 = inlined_call_operand.hbm [shape: bf16[3,128,256], index: 7, kind: input, shape index: {}]
  %s8 = inlined_call_operand.vmem [shape: f32[3,1,256], index: 8, kind: input, shape index: {}]
  %s9 = inlined_call_operand.hbm [shape: bf16[3,256,128], index: 9, kind: input, shape index: {}]
  %s10 = inlined_call_operand.vmem [shape: f32[3,1,128], index: 10, kind: input, shape index: {}]
  %s11 = inlined_call_operand.vmem [shape: f32[3,1,128], index: 11, kind: input, shape index: {}]
  %s12 = inlined_call_operand.vmem [shape: f32[3,1,128], index: 12, kind: input, shape index: {}]
  %s13 = inlined_call_operand.vmem [shape: bf16[128,8], index: 13, kind: input, shape index: {}]
  %s14 = inlined_call_operand.vmem [shape: f32[1,8], index: 14, kind: input, shape index: {}]
  %s15 = inlined_call_operand.hbm [shape: f32[8,8], index: 15, kind: output, shape index: {}]
  %s16 = sld [smem:[#allocation0]]
  $region82: #{tpu_custom_call.1} parent=0
    _
  %s18 = ssub.s32 1, %s16
  %s19 = scalar_select 0, %s18, %s16
  $region1: #{tpu_custom_call.1} parent=0
    #allocation2 [shape = 'u8[98304]{0}', space=vmem, size = 0x18000, scoped, tag = 'input window, operand 3, single buffered']
    #allocation3 [shape = 's32[1]{0}', space=sflag, size = 0x4, scoped, tag = 'scoped memory for tpu_custom_call.1']
    #allocation4 [shape = 's32[1]{0}', space=sflag, size = 0x4, scoped, tag = 'scoped memory for tpu_custom_call.1']
    #allocation5 [shape = 'u8[196608]{0}', space=vmem, size = 0x30000, scoped, tag = 'input window, operand 7, single buffered']
    #allocation6 [shape = 's32[1]{0}', space=sflag, size = 0x4, scoped, tag = 'scoped memory for tpu_custom_call.1']
    #allocation7 [shape = 'u8[196608]{0}', space=vmem, size = 0x30000, scoped, tag = 'input window, operand 9, single buffered']
    #allocation8 [shape = 'u8[4096]{0}', space=vmem, size = 0x1000, scoped, tag = 'output window, operand 0, single buffered']
    %20 = vsyncpa [#allocation3], 0
    %21 = vsyncpa [#allocation6], 0
    %22 = vsyncpa [#allocation4], 0
    // Predicated region
    $region2: #{tpu_custom_call.1} parent=1 // pred_check
      _
    $region3: #{tpu_custom_call.1} parent=1 // pred_check_branch
      %24 = sbr.rel (0) target = $region5
    $region4: #{tpu_custom_call.1} parent=1 // pred_region
      _
    $region5: #{tpu_custom_call.1} parent=1 // pred_fallthru
      _
    // Predicated region
    $region6: #{tpu_custom_call.1} parent=1 // pred_check
      _
    $region7: #{tpu_custom_call.1} parent=1 // pred_check_branch
      %26 = sbr.rel (0) target = $region9
    $region8: #{tpu_custom_call.1} parent=1 // pred_region
      _
    $region9: #{tpu_custom_call.1} parent=1 // pred_fallthru
      _
    // Predicated region
    $region10: #{tpu_custom_call.1} parent=1 // pred_check
      _
    $region11: #{tpu_custom_call.1} parent=1 // pred_check_branch
      %28 = sbr.rel (0) target = $region13
    $region12: #{tpu_custom_call.1} parent=1 // pred_region
      _
    $region13: #{tpu_custom_call.1} parent=1 // pred_fallthru
      _
    // Predicated region
    $region14: #{tpu_custom_call.1} parent=1 // pred_check
      _
    $region15: #{tpu_custom_call.1} parent=1 // pred_check_branch
      %30 = sbr.rel (0) target = $region17
    $region16: #{tpu_custom_call.1} parent=1 // pred_region
      %s32 = ssub.s32 3072, 3072
      %33 = vsyncadd [#allocation3], %s32
      %s34 = sshll.u32 [#allocation2], 4
      %s35 = int_to_ptr.vmem [resolvable:$true] %s34
      %40 = dma.hbm_to_vmem [thread:$0]  %s3, 3072, %s35, [#allocation3], 64, 64, 4
    $region17: #{tpu_custom_call.1} parent=1 // pred_fallthru
      _
    // Predicated region
    $region18: #{tpu_custom_call.1} parent=1 // pred_check
      _
    $region19: #{tpu_custom_call.1} parent=1 // pred_check_branch
      %42 = sbr.rel (0) target = $region21
    $region20: #{tpu_custom_call.1} parent=1 // pred_region
      _
    $region21: #{tpu_custom_call.1} parent=1 // pred_fallthru
      _
    // Predicated region
    $region22: #{tpu_custom_call.1} parent=1 // pred_check
      _
    $region23: #{tpu_custom_call.1} parent=1 // pred_check_branch
      %44 = sbr.rel (0) target = $region25
    $region24: #{tpu_custom_call.1} parent=1 // pred_region
      _
    $region25: #{tpu_custom_call.1} parent=1 // pred_fallthru
      _
    // Predicated region
    $region26: #{tpu_custom_call.1} parent=1 // pred_check
      _
    $region27: #{tpu_custom_call.1} parent=1 // pred_check_branch
      %46 = sbr.rel (0) target = $region29
    $region28: #{tpu_custom_call.1} parent=1 // pred_region
      _
    $region29: #{tpu_custom_call.1} parent=1 // pred_fallthru
      _
    // Predicated region
    $region30: #{tpu_custom_call.1} parent=1 // pred_check
      _
    $region31: #{tpu_custom_call.1} parent=1 // pred_check_branch
      %48 = sbr.rel (0) target = $region33
    $region32: #{tpu_custom_call.1} parent=1 // pred_region
      %s50 = ssub.s32 6144, 6144
      %51 = vsyncadd [#allocation6], %s50
      %s52 = sshll.u32 [#allocation5], 4
      %s53 = int_to_ptr.vmem [resolvable:$true] %s52
      %58 = dma.hbm_to_vmem [thread:$0]  %s7, 6144, %s53, [#allocation6], 128, 128, 8
    $region33: #{tpu_custom_call.1} parent=1 // pred_fallthru
      _
    // Predicated region
    $region34: #{tpu_custom_call.1} parent=1 // pred_check
      _
    $region35: #{tpu_custom_call.1} parent=1 // pred_check_branch
      %60 = sbr.rel (0) target = $region37
    $region36: #{tpu_custom_call.1} parent=1 // pred_region
      _
    $region37: #{tpu_custom_call.1} parent=1 // pred_fallthru
      _
    // Predicated region
    $region38: #{tpu_custom_call.1} parent=1 // pred_check
      _
    $region39: #{tpu_custom_call.1} parent=1 // pred_check_branch
      %62 = sbr.rel (0) target = $region41
    $region40: #{tpu_custom_call.1} parent=1 // pred_region
      %s64 = ssub.s32 6144, 6144
      %65 = vsyncadd [#allocation6], %s64
      %s66 = sshll.u32 [#allocation7], 4
      %s67 = int_to_ptr.vmem [resolvable:$true] %s66
      %72 = dma.hbm_to_vmem [thread:$0]  %s9, 6144, %s67, [#allocation6], 64, 64, 4
    $region41: #{tpu_custom_call.1} parent=1 // pred_fallthru
      _
    // Predicated region
    $region42: #{tpu_custom_call.1} parent=1 // pred_check
      _
    $region43: #{tpu_custom_call.1} parent=1 // pred_check_branch
      %74 = sbr.rel (0) target = $region45
    $region44: #{tpu_custom_call.1} parent=1 // pred_region
      _
    $region45: #{tpu_custom_call.1} parent=1 // pred_fallthru
      _
    // Predicated region
    $region46: #{tpu_custom_call.1} parent=1 // pred_check
      _
    $region47: #{tpu_custom_call.1} parent=1 // pred_check_branch
      %76 = sbr.rel (0) target = $region49
    $region48: #{tpu_custom_call.1} parent=1 // pred_region
      _
    $region49: #{tpu_custom_call.1} parent=1 // pred_fallthru
      _
    // Predicated region
    $region50: #{tpu_custom_call.1} parent=1 // pred_check
      _
    $region51: #{tpu_custom_call.1} parent=1 // pred_check_branch
      %78 = sbr.rel (0) target = $region53
    $region52: #{tpu_custom_call.1} parent=1 // pred_region
      _
    $region53: #{tpu_custom_call.1} parent=1 // pred_fallthru
      _
    // Predicated region
    $region54: #{tpu_custom_call.1} parent=1 // pred_check
      _
    $region55: #{tpu_custom_call.1} parent=1 // pred_check_branch
      %80 = sbr.rel (0) target = $region57
    $region56: #{tpu_custom_call.1} parent=1 // pred_region
      _
    $region57: #{tpu_custom_call.1} parent=1 // pred_fallthru
      _
    // Predicated region
    $region58: #{tpu_custom_call.1} parent=1 // pred_check
      _
    $region59: #{tpu_custom_call.1} parent=1 // pred_check_branch
      %82 = sbr.rel (0) target = $region61
    $region60: #{tpu_custom_call.1} parent=1 // pred_region
      _
    $region61: #{tpu_custom_call.1} parent=1 // pred_fallthru
      _
    // Predicated region
    $region62: #{tpu_custom_call.1} parent=1 // pred_check
      _
    $region63: #{tpu_custom_call.1} parent=1 // pred_check_branch
      %84 = sbr.rel (0) target = $region65
    $region64: #{tpu_custom_call.1} parent=1 // pred_region
      %85 = dma.done [#allocation3], 3072
    $region65: #{tpu_custom_call.1} parent=1 // pred_fallthru
      _
    // Predicated region
    $region66: #{tpu_custom_call.1} parent=1 // pred_check
      _
    $region67: #{tpu_custom_call.1} parent=1 // pred_check_branch
      %87 = sbr.rel (0) target = $region69
    $region68: #{tpu_custom_call.1} parent=1 // pred_region
      %88 = dma.done [#allocation6], 6144
    $region69: #{tpu_custom_call.1} parent=1 // pred_fallthru
      _
    // Predicated region
    $region70: #{tpu_custom_call.1} parent=1 // pred_check
      _
    $region71: #{tpu_custom_call.1} parent=1 // pred_check_branch
      %90 = sbr.rel (0) target = $region73
    $region72: #{tpu_custom_call.1} parent=1 // pred_region
      %91 = dma.done [#allocation6], 6144
    $region73: #{tpu_custom_call.1} parent=1 // pred_fallthru
      _
    %v93 = vld [vmem:[%s0] sm:$0xf]
    %v94 = vld [vmem:[%s1] sm:$0xf]
    %v95 = vld [vmem:[%s1 + $0x4] sm:$0xf]
    %v96 = vld [vmem:[%s1 + $0x8] sm:$0xf]
    %v97 = vld [vmem:[%s1 + $0xc] sm:$0xf]
    %v98 = vld [vmem:[%s2] sm:$0x1]
    %v100 = vlaneseq
    %v101 = vshrl.u32 %v100, 7
    %v102 = vsub.s32 0, %v101
    %v103 = vrot.slane %v98, %v102
    %v109 = vunpack.c.l.b16 %v94
    %v110 = vunpack.c.l.b16 %v95
    %v111 = vunpack.c.l.b16 %v96
    %v112 = vunpack.c.l.b16 %v97
    %v113 = vpack.c.b16 %v110, %v109
    %v114 = vpack.c.b16 %v112, %v111
    %vm117 = vcmask 261120
    %v119 = vsel %vm117, %v93, 0
    %121 = vmatprep.subr.bf16.mxu0 0
    %122 = vmatpush1.bf16.msra.mxu0 %v113
    %123 = vmatprep.subr.bf16.mxu0 0
    %124 = vmatpush1.bf16.msra.mxu0 %v114
    %125 = vmatprep.subr.bf16.mxu0 0
    %126 = vmatpush1.bf16.msra.mxu0 0
    %127 = vmatprep.subr.bf16.mxu0 0
    %128 = vmatpush1.bf16.msra.mxu0 0
    %129 = vmatprep.subr.bf16.mxu0 0
    %130 = vmatpush1.bf16.msra.mxu0 0
    %131 = vmatprep.subr.bf16.mxu0 0
    %132 = vmatpush1.bf16.msra.mxu0 0
    %133 = vmatprep.subr.bf16.mxu0 0
    %134 = vmatpush1.bf16.msra.mxu0 0
    %135 = vmatprep.subr.bf16.mxu0 0
    %136 = vmatpush1.bf16.msra.mxu0 0
    %137 = vmatprep.subr.bf16.mxu0 0
    %138 = vmatpush1.bf16.msra.mxu0 0
    %139 = vmatprep.subr.bf16.mxu0 0
    %140 = vmatpush1.bf16.msra.mxu0 0
    %141 = vmatprep.subr.bf16.mxu0 0
    %142 = vmatpush1.bf16.msra.mxu0 0
    %143 = vmatprep.subr.bf16.mxu0 0
    %144 = vmatpush1.bf16.msra.mxu0 0
    %145 = vmatprep.subr.bf16.mxu0 0
    %146 = vmatpush1.bf16.msra.mxu0 0
    %147 = vmatprep.subr.bf16.mxu0 0
    %148 = vmatpush1.bf16.msra.mxu0 0
    %149 = vmatprep.subr.bf16.mxu0 0
    %150 = vmatpush1.bf16.msra.mxu0 0
    %151 = vmatprep.subr.bf16.mxu0 0
    %152 = vmatpush1.bf16.msra.mxu0 0
    %153 = vmatprep.mubr.bf16.mxu0 0
    %154 = vmatmul.mubr.bf16.gmra.mrb[0].mxu0 %v119
    %v155 = vpop.f32.mrb[0].mxu0
    %v156 = vadd.f32 %v103, %v155
    %v157 = vpop.f32.mrb[0].mxu0
    %v158 = vpop.f32.mrb[0].mxu0
    %v159 = vpop.f32.mrb[0].mxu0
    %160 = vdwg.mxu0
    %v161 = vpack.c.bf16 %v156, %v156
    %v162 = vld [vmem:[#allocation2] sm:$0xf]
    %v163 = vld [vmem:[#allocation2 + $0x4] sm:$0xf]
    %v164 = vld [vmem:[#allocation2 + $0x8] sm:$0xf]
    %v165 = vld [vmem:[#allocation2 + $0xc] sm:$0xf]
    %v166 = vld [vmem:[#allocation2 + $0x10] sm:$0xf]
    %v167 = vld [vmem:[#allocation2 + $0x14] sm:$0xf]
    %v168 = vld [vmem:[#allocation2 + $0x18] sm:$0xf]
    %v169 = vld [vmem:[#allocation2 + $0x1c] sm:$0xf]
    %v170 = vld [vmem:[#allocation2 + $0x20] sm:$0xf]
    %v171 = vld [vmem:[#allocation2 + $0x24] sm:$0xf]
    %v172 = vld [vmem:[#allocation2 + $0x28] sm:$0xf]
    %v173 = vld [vmem:[#allocation2 + $0x2c] sm:$0xf]
    %v174 = vld [vmem:[#allocation2 + $0x30] sm:$0xf]
    %v175 = vld [vmem:[#allocation2 + $0x34] sm:$0xf]
    %v176 = vld [vmem:[#allocation2 + $0x38] sm:$0xf]
    %v177 = vld [vmem:[#allocation2 + $0x3c] sm:$0xf]
    %v178 = vld [vmem:[%s4] sm:$0x1]
    %v180 = vlaneseq
    %v181 = vshrl.u32 %v180, 7
    %v182 = vsub.s32 0, %v181
    %v183 = vrot.slane %v178, %v182
    %v201 = vunpack.c.l.b16 %v162
    %v202 = vunpack.c.l.b16 %v163
    %v203 = vunpack.c.l.b16 %v164
    %v204 = vunpack.c.l.b16 %v165
    %v205 = vunpack.c.l.b16 %v166
    %v206 = vunpack.c.l.b16 %v167
    %v207 = vunpack.c.l.b16 %v168
    %v208 = vunpack.c.l.b16 %v169
    %v209 = vunpack.c.l.b16 %v170
    %v210 = vunpack.c.l.b16 %v171
    %v211 = vunpack.c.l.b16 %v172
    %v212 = vunpack.c.l.b16 %v173
    %v213 = vunpack.c.l.b16 %v174
    %v214 = vunpack.c.l.b16 %v175
    %v215 = vunpack.c.l.b16 %v176
    %v216 = vunpack.c.l.b16 %v177
    %v217 = vpack.c.b16 %v202, %v201
    %v218 = vpack.c.b16 %v204, %v203
    %v219 = vpack.c.b16 %v206, %v205
    %v220 = vpack.c.b16 %v208, %v207
    %v221 = vpack.c.b16 %v210, %v209
    %v222 = vpack.c.b16 %v212, %v211
    %v223 = vpack.c.b16 %v214, %v213
    %v224 = vpack.c.b16 %v216, %v215
    %233 = vmatprep.subr.bf16.mxu0 0
    %234 = vmatpush1.bf16.msra.mxu0 %v217
    %235 = vmatprep.subr.bf16.mxu0 0
    %236 = vmatpush1.bf16.msra.mxu0 %v218
    %237 = vmatprep.subr.bf16.mxu0 0
    %238 = vmatpush1.bf16.msra.mxu0 %v219
    %239 = vmatprep.subr.bf16.mxu0 0
    %240 = vmatpush1.bf16.msra.mxu0 %v220
    %241 = vmatprep.subr.bf16.mxu0 0
    %242 = vmatpush1.bf16.msra.mxu0 %v221
    %243 = vmatprep.subr.bf16.mxu0 0
    %244 = vmatpush1.bf16.msra.mxu0 %v222
    %245 = vmatprep.subr.bf16.mxu0 0
    %246 = vmatpush1.bf16.msra.mxu0 %v223
    %247 = vmatprep.subr.bf16.mxu0 0
    %248 = vmatpush1.bf16.msra.mxu0 %v224
    %249 = vmatprep.subr.bf16.mxu0 0
    %250 = vmatpush1.bf16.msra.mxu0 0
    %251 = vmatprep.subr.bf16.mxu0 0
    %252 = vmatpush1.bf16.msra.mxu0 0
    %253 = vmatprep.subr.bf16.mxu0 0
    %254 = vmatpush1.bf16.msra.mxu0 0
    %255 = vmatprep.subr.bf16.mxu0 0
    %256 = vmatpush1.bf16.msra.mxu0 0
    %257 = vmatprep.subr.bf16.mxu0 0
    %258 = vmatpush1.bf16.msra.mxu0 0
    %259 = vmatprep.subr.bf16.mxu0 0
    %260 = vmatpush1.bf16.msra.mxu0 0
    %261 = vmatprep.subr.bf16.mxu0 0
    %262 = vmatpush1.bf16.msra.mxu0 0
    %263 = vmatprep.subr.bf16.mxu0 0
    %264 = vmatpush1.bf16.msra.mxu0 0
    %265 = vmatprep.mubr.bf16.mxu0 0
    %266 = vmatmul.mubr.bf16.gmra.mrb[0].mxu0 %v161
    %v267 = vpop.f32.mrb[0].mxu0
    %v268 = vadd.f32 %v183, %v267
    %v269 = vpop.f32.mrb[0].mxu0
    %v270 = vpop.f32.mrb[0].mxu0
    %v271 = vpop.f32.mrb[0].mxu0
    %272 = vdwg.mxu0
    %v273 = vld [vmem:[%s5] sm:$0x1]
    %v274 = vld [vmem:[%s6] sm:$0x1]
    %275 = vadd.xlane.f32.xlu0 %v268
    %v276 = vpop.xlane.xlu0 %275
    %v277 = vrcp.pop 128.0
    %v278 = vmul.f32 %v276, %v277
    %v279 = vmul.f32 %v268, %v268
    %280 = vadd.xlane.f32.xlu0 %v279
    %v281 = vpop.xlane.xlu0 %280
    %v282 = vmul.f32 %v281, %v277
    %v283 = vmul.f32 %v278, %v278
    %v284 = vsub.f32 %v282, %v283
    %v285 = vmax.f32 %v284, 0.0
    %v286 = vadd.f32 %v285, 1e-05
    %v287 = vrsqrt.pop %v286
    %v288 = vsub.f32 %v268, %v278
    %v290 = vlaneseq
    %v291 = vshrl.u32 %v290, 7
    %v292 = vsub.s32 0, %v291
    %v293 = vrot.slane %v273, %v292
    %v295 = vmul.f32 %v287, %v293
    %v296 = vmul.f32 %v288, %v295
    %v298 = vlaneseq
    %v299 = vshrl.u32 %v298, 7
    %v300 = vsub.s32 0, %v299
    %v301 = vrot.slane %v274, %v300
    %v303 = vadd.f32 %v296, %v301
    %v304 = vpack.c.bf16 %v303, %v303
    %v305 = vld [vmem:[#allocation5] sm:$0xff]
    %v306 = vld [vmem:[#allocation5 + $0x8] sm:$0xff]
    %v307 = vld [vmem:[#allocation5 + $0x10] sm:$0xff]
    %v308 = vld [vmem:[#allocation5 + $0x18] sm:$0xff]
    %v309 = vld [vmem:[#allocation5 + $0x20] sm:$0xff]
    %v310 = vld [vmem:[#allocation5 + $0x28] sm:$0xff]
    %v311 = vld [vmem:[#allocation5 + $0x30] sm:$0xff]
    %v312 = vld [vmem:[#allocation5 + $0x38] sm:$0xff]
    %v313 = vld [vmem:[#allocation5 + $0x40] sm:$0xff]
    %v314 = vld [vmem:[#allocation5 + $0x48] sm:$0xff]
    %v315 = vld [vmem:[#allocation5 + $0x50] sm:$0xff]
    %v316 = vld [vmem:[#allocation5 + $0x58] sm:$0xff]
    %v317 = vld [vmem:[#allocation5 + $0x60] sm:$0xff]
    %v318 = vld [vmem:[#allocation5 + $0x68] sm:$0xff]
    %v319 = vld [vmem:[#allocation5 + $0x70] sm:$0xff]
    %v320 = vld [vmem:[#allocation5 + $0x78] sm:$0xff]
    %v321 = vld [vmem:[%s8] sm:$0x3]
    %v323 = vlaneseq
    %v324 = vshrl.u32 %v323, 7
    %v325 = vsub.s32 0, %v324
    %v326 = vrot.slane %v321, %v325
    %v327 = vlaneseq
    %v328 = vshrl.u32 %v327, 7
    %v329 = vsub.s32 1, %v328
    %v330 = vrot.slane %v321, %v329
    %v349 = vunpack.c.l.b16 %v305
    %v350 = vunpack.c.h.b16 %v305
    %v351 = vunpack.c.l.b16 %v306
    %v352 = vunpack.c.h.b16 %v306
    %v353 = vunpack.c.l.b16 %v307
    %v354 = vunpack.c.h.b16 %v307
    %v355 = vunpack.c.l.b16 %v308
    %v356 = vunpack.c.h.b16 %v308
    %v357 = vunpack.c.l.b16 %v309
    %v358 = vunpack.c.h.b16 %v309
    %v359 = vunpack.c.l.b16 %v310
    %v360 = vunpack.c.h.b16 %v310
    %v361 = vunpack.c.l.b16 %v311
    %v362 = vunpack.c.h.b16 %v311
    %v363 = vunpack.c.l.b16 %v312
    %v364 = vunpack.c.h.b16 %v312
    %v365 = vunpack.c.l.b16 %v313
    %v366 = vunpack.c.h.b16 %v313
    %v367 = vunpack.c.l.b16 %v314
    %v368 = vunpack.c.h.b16 %v314
    %v369 = vunpack.c.l.b16 %v315
    %v370 = vunpack.c.h.b16 %v315
    %v371 = vunpack.c.l.b16 %v316
    %v372 = vunpack.c.h.b16 %v316
    %v373 = vunpack.c.l.b16 %v317
    %v374 = vunpack.c.h.b16 %v317
    %v375 = vunpack.c.l.b16 %v318
    %v376 = vunpack.c.h.b16 %v318
    %v377 = vunpack.c.l.b16 %v319
    %v378 = vunpack.c.h.b16 %v319
    %v379 = vunpack.c.l.b16 %v320
    %v380 = vunpack.c.h.b16 %v320
    %v381 = vpack.c.b16 %v351, %v349
    %v382 = vpack.c.b16 %v352, %v350
    %v383 = vpack.c.b16 %v355, %v353
    %v384 = vpack.c.b16 %v356, %v354
    %v385 = vpack.c.b16 %v359, %v357
    %v386 = vpack.c.b16 %v360, %v358
    %v387 = vpack.c.b16 %v363, %v361
    %v388 = vpack.c.b16 %v364, %v362
    %v389 = vpack.c.b16 %v367, %v365
    %v390 = vpack.c.b16 %v368, %v366
    %v391 = vpack.c.b16 %v371, %v369
    %v392 = vpack.c.b16 %v372, %v370
    %v393 = vpack.c.b16 %v375, %v373
    %v394 = vpack.c.b16 %v376, %v374
    %v395 = vpack.c.b16 %v379, %v377
    %v396 = vpack.c.b16 %v380, %v378
    %413 = vmatprep.subr.bf16.mxu0 %v382
    %414 = vmatpush1.bf16.msra.mxu0 %v381
    %415 = vmatprep.subr.bf16.mxu0 %v384
    %416 = vmatpush1.bf16.msra.mxu0 %v383
    %417 = vmatprep.subr.bf16.mxu0 %v386
    %418 = vmatpush1.bf16.msra.mxu0 %v385
    %419 = vmatprep.subr.bf16.mxu0 %v388
    %420 = vmatpush1.bf16.msra.mxu0 %v387
    %421 = vmatprep.subr.bf16.mxu0 %v390
    %422 = vmatpush1.bf16.msra.mxu0 %v389
    %423 = vmatprep.subr.bf16.mxu0 %v392
    %424 = vmatpush1.bf16.msra.mxu0 %v391
    %425 = vmatprep.subr.bf16.mxu0 %v394
    %426 = vmatpush1.bf16.msra.mxu0 %v393
    %427 = vmatprep.subr.bf16.mxu0 %v396
    %428 = vmatpush1.bf16.msra.mxu0 %v395
    %429 = vmatprep.subr.bf16.mxu0 0
    %430 = vmatpush1.bf16.msra.mxu0 0
    %431 = vmatprep.subr.bf16.mxu0 0
    %432 = vmatpush1.bf16.msra.mxu0 0
    %433 = vmatprep.subr.bf16.mxu0 0
    %434 = vmatpush1.bf16.msra.mxu0 0
    %435 = vmatprep.subr.bf16.mxu0 0
    %436 = vmatpush1.bf16.msra.mxu0 0
    %437 = vmatprep.subr.bf16.mxu0 0
    %438 = vmatpush1.bf16.msra.mxu0 0
    %439 = vmatprep.subr.bf16.mxu0 0
    %440 = vmatpush1.bf16.msra.mxu0 0
    %441 = vmatprep.subr.bf16.mxu0 0
    %442 = vmatpush1.bf16.msra.mxu0 0
    %443 = vmatprep.subr.bf16.mxu0 0
    %444 = vmatpush1.bf16.msra.mxu0 0
    %445 = vmatprep.mubr.bf16.mxu0 0
    %446 = vmatmul.mubr.bf16.gmra.mrb[0].mxu0 %v304
    %v447 = vpop.f32.mrb[0].mxu0
    %v448 = vadd.f32 %v326, %v447
    %v449 = vpop.f32.mrb[0].mxu0
    %v450 = vadd.f32 %v330, %v449
    %v451 = vpop.f32.mrb[0].mxu0
    %v452 = vpop.f32.mrb[0].mxu0
    %453 = vdwg.mxu0
    %v454 = vmax.f32 %v448, 0.0
    %v455 = vmax.f32 %v450, 0.0
    %v456 = vpack.c.bf16 %v454, %v454
    %v457 = vpack.c.bf16 %v455, %v455
    %v458 = vld [vmem:[#allocation7] sm:$0xf]
    %v459 = vld [vmem:[#allocation7 + $0x4] sm:$0xf]
    %v460 = vld [vmem:[#allocation7 + $0x8] sm:$0xf]
    %v461 = vld [vmem:[#allocation7 + $0xc] sm:$0xf]
    %v462 = vld [vmem:[#allocation7 + $0x10] sm:$0xf]
    %v463 = vld [vmem:[#allocation7 + $0x14] sm:$0xf]
    %v464 = vld [vmem:[#allocation7 + $0x18] sm:$0xf]
    %v465 = vld [vmem:[#allocation7 + $0x1c] sm:$0xf]
    %v466 = vld [vmem:[#allocation7 + $0x20] sm:$0xf]
    %v467 = vld [vmem:[#allocation7 + $0x24] sm:$0xf]
    %v468 = vld [vmem:[#allocation7 + $0x28] sm:$0xf]
    %v469 = vld [vmem:[#allocation7 + $0x2c] sm:$0xf]
    %v470 = vld [vmem:[#allocation7 + $0x30] sm:$0xf]
    %v471 = vld [vmem:[#allocation7 + $0x34] sm:$0xf]
    %v472 = vld [vmem:[#allocation7 + $0x38] sm:$0xf]
    %v473 = vld [vmem:[#allocation7 + $0x3c] sm:$0xf]
    %v474 = vld [vmem:[#allocation7 + $0x40] sm:$0xf]
    %v475 = vld [vmem:[#allocation7 + $0x44] sm:$0xf]
    %v476 = vld [vmem:[#allocation7 + $0x48] sm:$0xf]
    %v477 = vld [vmem:[#allocation7 + $0x4c] sm:$0xf]
    %v478 = vld [vmem:[#allocation7 + $0x50] sm:$0xf]
    %v479 = vld [vmem:[#allocation7 + $0x54] sm:$0xf]
    %v480 = vld [vmem:[#allocation7 + $0x58] sm:$0xf]
    %v481 = vld [vmem:[#allocation7 + $0x5c] sm:$0xf]
    %v482 = vld [vmem:[#allocation7 + $0x60] sm:$0xf]
    %v483 = vld [vmem:[#allocation7 + $0x64] sm:$0xf]
    %v484 = vld [vmem:[#allocation7 + $0x68] sm:$0xf]
    %v485 = vld [vmem:[#allocation7 + $0x6c] sm:$0xf]
    %v486 = vld [vmem:[#allocation7 + $0x70] sm:$0xf]
    %v487 = vld [vmem:[#allocation7 + $0x74] sm:$0xf]
    %v488 = vld [vmem:[#allocation7 + $0x78] sm:$0xf]
    %v489 = vld [vmem:[#allocation7 + $0x7c] sm:$0xf]
    %v490 = vld [vmem:[%s10] sm:$0x1]
    %v492 = vlaneseq
    %v493 = vshrl.u32 %v492, 7
    %v494 = vsub.s32 0, %v493
    %v495 = vrot.slane %v490, %v494
    %v529 = vunpack.c.l.b16 %v458
    %v530 = vunpack.c.l.b16 %v459
    %v531 = vunpack.c.l.b16 %v460
    %v532 = vunpack.c.l.b16 %v461
    %v533 = vunpack.c.l.b16 %v462
    %v534 = vunpack.c.l.b16 %v463
    %v535 = vunpack.c.l.b16 %v464
    %v536 = vunpack.c.l.b16 %v465
    %v537 = vunpack.c.l.b16 %v466
    %v538 = vunpack.c.l.b16 %v467
    %v539 = vunpack.c.l.b16 %v468
    %v540 = vunpack.c.l.b16 %v469
    %v541 = vunpack.c.l.b16 %v470
    %v542 = vunpack.c.l.b16 %v471
    %v543 = vunpack.c.l.b16 %v472
    %v544 = vunpack.c.l.b16 %v473
    %v545 = vunpack.c.l.b16 %v474
    %v546 = vunpack.c.l.b16 %v475
    %v547 = vunpack.c.l.b16 %v476
    %v548 = vunpack.c.l.b16 %v477
    %v549 = vunpack.c.l.b16 %v478
    %v550 = vunpack.c.l.b16 %v479
    %v551 = vunpack.c.l.b16 %v480
    %v552 = vunpack.c.l.b16 %v481
    %v553 = vunpack.c.l.b16 %v482
    %v554 = vunpack.c.l.b16 %v483
    %v555 = vunpack.c.l.b16 %v484
    %v556 = vunpack.c.l.b16 %v485
    %v557 = vunpack.c.l.b16 %v486
    %v558 = vunpack.c.l.b16 %v487
    %v559 = vunpack.c.l.b16 %v488
    %v560 = vunpack.c.l.b16 %v489
    %v561 = vpack.c.b16 %v530, %v529
    %v562 = vpack.c.b16 %v532, %v531
    %v563 = vpack.c.b16 %v534, %v533
    %v564 = vpack.c.b16 %v536, %v535
    %v565 = vpack.c.b16 %v538, %v537
    %v566 = vpack.c.b16 %v540, %v539
    %v567 = vpack.c.b16 %v542, %v541
    %v568 = vpack.c.b16 %v544, %v543
    %v569 = vpack.c.b16 %v546, %v545
    %v570 = vpack.c.b16 %v548, %v547
    %v571 = vpack.c.b16 %v550, %v549
    %v572 = vpack.c.b16 %v552, %v551
    %v573 = vpack.c.b16 %v554, %v553
    %v574 = vpack.c.b16 %v556, %v555
    %v575 = vpack.c.b16 %v558, %v557
    %v576 = vpack.c.b16 %v560, %v559
    %593 = vmatprep.subr.bf16.mxu0 0
    %594 = vmatpush1.bf16.msra.mxu0 %v561
    %595 = vmatprep.subr.bf16.mxu0 0
    %596 = vmatpush1.bf16.msra.mxu0 %v562
    %597 = vmatprep.subr.bf16.mxu0 0
    %598 = vmatpush1.bf16.msra.mxu0 %v563
    %599 = vmatprep.subr.bf16.mxu0 0
    %600 = vmatpush1.bf16.msra.mxu0 %v564
    %601 = vmatprep.subr.bf16.mxu0 0
    %602 = vmatpush1.bf16.msra.mxu0 %v565
    %603 = vmatprep.subr.bf16.mxu0 0
    %604 = vmatpush1.bf16.msra.mxu0 %v566
    %605 = vmatprep.subr.bf16.mxu0 0
    %606 = vmatpush1.bf16.msra.mxu0 %v567
    %607 = vmatprep.subr.bf16.mxu0 0
    %608 = vmatpush1.bf16.msra.mxu0 %v568
    %609 = vmatprep.subr.bf16.mxu0 0
    %610 = vmatpush1.bf16.msra.mxu0 %v569
    %611 = vmatprep.subr.bf16.mxu0 0
    %612 = vmatpush1.bf16.msra.mxu0 %v570
    %613 = vmatprep.subr.bf16.mxu0 0
    %614 = vmatpush1.bf16.msra.mxu0 %v571
    %615 = vmatprep.subr.bf16.mxu0 0
    %616 = vmatpush1.bf16.msra.mxu0 %v572
    %617 = vmatprep.subr.bf16.mxu0 0
    %618 = vmatpush1.bf16.msra.mxu0 %v573
    %619 = vmatprep.subr.bf16.mxu0 0
    %620 = vmatpush1.bf16.msra.mxu0 %v574
    %621 = vmatprep.subr.bf16.mxu0 0
    %622 = vmatpush1.bf16.msra.mxu0 %v575
    %623 = vmatprep.subr.bf16.mxu0 0
    %624 = vmatpush1.bf16.msra.mxu0 %v576
    %625 = vmatprep.mubr.bf16.mxu0 %v457
    %626 = vmatmul.mubr.bf16.gmra.mrb[0].mxu0 %v456
    %v627 = vpop.f32.mrb[0].mxu0
    %v628 = vadd.f32 %v495, %v627
    %v629 = vpop.f32.mrb[0].mxu0
    %v630 = vpop.f32.mrb[0].mxu0
    %v631 = vpop.f32.mrb[0].mxu0
    %632 = vdwg.mxu0
    %v633 = vadd.f32 %v303, %v628
    %v634 = vld [vmem:[%s11] sm:$0x1]
    %v635 = vld [vmem:[%s12] sm:$0x1]
    %636 = vadd.xlane.f32.xlu0 %v633
    %v637 = vpop.xlane.xlu0 %636
    %v638 = vmul.f32 %v637, %v277
    %v639 = vmul.f32 %v633, %v633
    %640 = vadd.xlane.f32.xlu0 %v639
    %v641 = vpop.xlane.xlu0 %640
    %v642 = vmul.f32 %v641, %v277
    %v643 = vmul.f32 %v638, %v638
    %v644 = vsub.f32 %v642, %v643
    %v645 = vmax.f32 %v644, 0.0
    %v646 = vadd.f32 %v645, 1e-05
    %v647 = vrsqrt.pop %v646
    %v648 = vsub.f32 %v633, %v638
    %v650 = vlaneseq
    %v651 = vshrl.u32 %v650, 7
    %v652 = vsub.s32 0, %v651
    %v653 = vrot.slane %v634, %v652
    %v655 = vmul.f32 %v647, %v653
    %v656 = vmul.f32 %v648, %v655
    %v658 = vlaneseq
    %v659 = vshrl.u32 %v658, 7
    %v660 = vsub.s32 0, %v659
    %v661 = vrot.slane %v635, %v660
    %v663 = vadd.f32 %v656, %v661
    %v664 = vpack.c.bf16 %v663, %v663
    %s665 = scalar_lea.vmem [#allocation2], 64
    %v666 = vld [vmem:[%s665] sm:$0xf]
    %v667 = vld [vmem:[%s665 + $0x4] sm:$0xf]
    %v668 = vld [vmem:[%s665 + $0x8] sm:$0xf]
    %v669 = vld [vmem:[%s665 + $0xc] sm:$0xf]
    %v670 = vld [vmem:[%s665 + $0x10] sm:$0xf]
    %v671 = vld [vmem:[%s665 + $0x14] sm:$0xf]
    %v672 = vld [vmem:[%s665 + $0x18] sm:$0xf]
    %v673 = vld [vmem:[%s665 + $0x1c] sm:$0xf]
    %v674 = vld [vmem:[%s665 + $0x20] sm:$0xf]
    %v675 = vld [vmem:[%s665 + $0x24] sm:$0xf]
    %v676 = vld [vmem:[%s665 + $0x28] sm:$0xf]
    %v677 = vld [vmem:[%s665 + $0x2c] sm:$0xf]
    %v678 = vld [vmem:[%s665 + $0x30] sm:$0xf]
    %v679 = vld [vmem:[%s665 + $0x34] sm:$0xf]
    %v680 = vld [vmem:[%s665 + $0x38] sm:$0xf]
    %v681 = vld [vmem:[%s665 + $0x3c] sm:$0xf]
    %s682 = scalar_lea.vmem %s4, 1
    %v683 = vld [vmem:[%s682] sm:$0x1]
    %v685 = vlaneseq
    %v686 = vshrl.u32 %v685, 7
    %v687 = vsub.s32 0, %v686
    %v688 = vrot.slane %v683, %v687
    %v706 = vunpack.c.l.b16 %v666
    %v707 = vunpack.c.l.b16 %v667
    %v708 = vunpack.c.l.b16 %v668
    %v709 = vunpack.c.l.b16 %v669
    %v710 = vunpack.c.l.b16 %v670
    %v711 = vunpack.c.l.b16 %v671
    %v712 = vunpack.c.l.b16 %v672
    %v713 = vunpack.c.l.b16 %v673
    %v714 = vunpack.c.l.b16 %v674
    %v715 = vunpack.c.l.b16 %v675
    %v716 = vunpack.c.l.b16 %v676
    %v717 = vunpack.c.l.b16 %v677
    %v718 = vunpack.c.l.b16 %v678
    %v719 = vunpack.c.l.b16 %v679
    %v720 = vunpack.c.l.b16 %v680
    %v721 = vunpack.c.l.b16 %v681
    %v722 = vpack.c.b16 %v707, %v706
    %v723 = vpack.c.b16 %v709, %v708
    %v724 = vpack.c.b16 %v711, %v710
    %v725 = vpack.c.b16 %v713, %v712
    %v726 = vpack.c.b16 %v715, %v714
    %v727 = vpack.c.b16 %v717, %v716
    %v728 = vpack.c.b16 %v719, %v718
    %v729 = vpack.c.b16 %v721, %v720
    %738 = vmatprep.subr.bf16.mxu0 0
    %739 = vmatpush1.bf16.msra.mxu0 %v722
    %740 = vmatprep.subr.bf16.mxu0 0
    %741 = vmatpush1.bf16.msra.mxu0 %v723
    %742 = vmatprep.subr.bf16.mxu0 0
    %743 = vmatpush1.bf16.msra.mxu0 %v724
    %744 = vmatprep.subr.bf16.mxu0 0
    %745 = vmatpush1.bf16.msra.mxu0 %v725
    %746 = vmatprep.subr.bf16.mxu0 0
    %747 = vmatpush1.bf16.msra.mxu0 %v726
    %748 = vmatprep.subr.bf16.mxu0 0
    %749 = vmatpush1.bf16.msra.mxu0 %v727
    %750 = vmatprep.subr.bf16.mxu0 0
    %751 = vmatpush1.bf16.msra.mxu0 %v728
    %752 = vmatprep.subr.bf16.mxu0 0
    %753 = vmatpush1.bf16.msra.mxu0 %v729
    %754 = vmatprep.subr.bf16.mxu0 0
    %755 = vmatpush1.bf16.msra.mxu0 0
    %756 = vmatprep.subr.bf16.mxu0 0
    %757 = vmatpush1.bf16.msra.mxu0 0
    %758 = vmatprep.subr.bf16.mxu0 0
    %759 = vmatpush1.bf16.msra.mxu0 0
    %760 = vmatprep.subr.bf16.mxu0 0
    %761 = vmatpush1.bf16.msra.mxu0 0
    %762 = vmatprep.subr.bf16.mxu0 0
    %763 = vmatpush1.bf16.msra.mxu0 0
    %764 = vmatprep.subr.bf16.mxu0 0
    %765 = vmatpush1.bf16.msra.mxu0 0
    %766 = vmatprep.subr.bf16.mxu0 0
    %767 = vmatpush1.bf16.msra.mxu0 0
    %768 = vmatprep.subr.bf16.mxu0 0
    %769 = vmatpush1.bf16.msra.mxu0 0
    %770 = vmatprep.mubr.bf16.mxu0 0
    %771 = vmatmul.mubr.bf16.gmra.mrb[0].mxu0 %v664
    %v772 = vpop.f32.mrb[0].mxu0
    %v773 = vadd.f32 %v688, %v772
    %v774 = vpop.f32.mrb[0].mxu0
    %v775 = vpop.f32.mrb[0].mxu0
    %v776 = vpop.f32.mrb[0].mxu0
    %777 = vdwg.mxu0
    %s778 = scalar_lea.vmem %s5, 1
    %v779 = vld [vmem:[%s778] sm:$0x1]
    %s780 = scalar_lea.vmem %s6, 1
    %v781 = vld [vmem:[%s780] sm:$0x1]
    %782 = vadd.xlane.f32.xlu0 %v773
    %v783 = vpop.xlane.xlu0 %782
    %v784 = vmul.f32 %v783, %v277
    %v785 = vmul.f32 %v773, %v773
    %786 = vadd.xlane.f32.xlu0 %v785
    %v787 = vpop.xlane.xlu0 %786
    %v788 = vmul.f32 %v787, %v277
    %v789 = vmul.f32 %v784, %v784
    %v790 = vsub.f32 %v788, %v789
    %v791 = vmax.f32 %v790, 0.0
    %v792 = vadd.f32 %v791, 1e-05
    %v793 = vrsqrt.pop %v792
    %v794 = vsub.f32 %v773, %v784
    %v796 = vlaneseq
    %v797 = vshrl.u32 %v796, 7
    %v798 = vsub.s32 0, %v797
    %v799 = vrot.slane %v779, %v798
    %v801 = vmul.f32 %v793, %v799
    %v802 = vmul.f32 %v794, %v801
    %v804 = vlaneseq
    %v805 = vshrl.u32 %v804, 7
    %v806 = vsub.s32 0, %v805
    %v807 = vrot.slane %v781, %v806
    %v809 = vadd.f32 %v802, %v807
    %v810 = vpack.c.bf16 %v809, %v809
    %s811 = scalar_lea.vmem [#allocation5], 128
    %v812 = vld [vmem:[%s811] sm:$0xff]
    %v813 = vld [vmem:[%s811 + $0x8] sm:$0xff]
    %v814 = vld [vmem:[%s811 + $0x10] sm:$0xff]
    %v815 = vld [vmem:[%s811 + $0x18] sm:$0xff]
    %v816 = vld [vmem:[%s811 + $0x20] sm:$0xff]
    %v817 = vld [vmem:[%s811 + $0x28] sm:$0xff]
    %v818 = vld [vmem:[%s811 + $0x30] sm:$0xff]
    %v819 = vld [vmem:[%s811 + $0x38] sm:$0xff]
    %v820 = vld [vmem:[%s811 + $0x40] sm:$0xff]
    %v821 = vld [vmem:[%s811 + $0x48] sm:$0xff]
    %v822 = vld [vmem:[%s811 + $0x50] sm:$0xff]
    %v823 = vld [vmem:[%s811 + $0x58] sm:$0xff]
    %v824 = vld [vmem:[%s811 + $0x60] sm:$0xff]
    %v825 = vld [vmem:[%s811 + $0x68] sm:$0xff]
    %v826 = vld [vmem:[%s811 + $0x70] sm:$0xff]
    %v827 = vld [vmem:[%s811 + $0x78] sm:$0xff]
    %s828 = scalar_lea.vmem %s8, 2
    %v829 = vld [vmem:[%s828] sm:$0x3]
    %v831 = vlaneseq
    %v832 = vshrl.u32 %v831, 7
    %v833 = vsub.s32 0, %v832
    %v834 = vrot.slane %v829, %v833
    %v835 = vlaneseq
    %v836 = vshrl.u32 %v835, 7
    %v837 = vsub.s32 1, %v836
    %v838 = vrot.slane %v829, %v837
    %v857 = vunpack.c.l.b16 %v812
    %v858 = vunpack.c.h.b16 %v812
    %v859 = vunpack.c.l.b16 %v813
    %v860 = vunpack.c.h.b16 %v813
    %v861 = vunpack.c.l.b16 %v814
    %v862 = vunpack.c.h.b16 %v814
    %v863 = vunpack.c.l.b16 %v815
    %v864 = vunpack.c.h.b16 %v815
    %v865 = vunpack.c.l.b16 %v816
    %v866 = vunpack.c.h.b16 %v816
    %v867 = vunpack.c.l.b16 %v817
    %v868 = vunpack.c.h.b16 %v817
    %v869 = vunpack.c.l.b16 %v818
    %v870 = vunpack.c.h.b16 %v818
    %v871 = vunpack.c.l.b16 %v819
    %v872 = vunpack.c.h.b16 %v819
    %v873 = vunpack.c.l.b16 %v820
    %v874 = vunpack.c.h.b16 %v820
    %v875 = vunpack.c.l.b16 %v821
    %v876 = vunpack.c.h.b16 %v821
    %v877 = vunpack.c.l.b16 %v822
    %v878 = vunpack.c.h.b16 %v822
    %v879 = vunpack.c.l.b16 %v823
    %v880 = vunpack.c.h.b16 %v823
    %v881 = vunpack.c.l.b16 %v824
    %v882 = vunpack.c.h.b16 %v824
    %v883 = vunpack.c.l.b16 %v825
    %v884 = vunpack.c.h.b16 %v825
    %v885 = vunpack.c.l.b16 %v826
    %v886 = vunpack.c.h.b16 %v826
    %v887 = vunpack.c.l.b16 %v827
    %v888 = vunpack.c.h.b16 %v827
    %v889 = vpack.c.b16 %v859, %v857
    %v890 = vpack.c.b16 %v860, %v858
    %v891 = vpack.c.b16 %v863, %v861
    %v892 = vpack.c.b16 %v864, %v862
    %v893 = vpack.c.b16 %v867, %v865
    %v894 = vpack.c.b16 %v868, %v866
    %v895 = vpack.c.b16 %v871, %v869
    %v896 = vpack.c.b16 %v872, %v870
    %v897 = vpack.c.b16 %v875, %v873
    %v898 = vpack.c.b16 %v876, %v874
    %v899 = vpack.c.b16 %v879, %v877
    %v900 = vpack.c.b16 %v880, %v878
    %v901 = vpack.c.b16 %v883, %v881
    %v902 = vpack.c.b16 %v884, %v882
    %v903 = vpack.c.b16 %v887, %v885
    %v904 = vpack.c.b16 %v888, %v886
    %921 = vmatprep.subr.bf16.mxu0 %v890
    %922 = vmatpush1.bf16.msra.mxu0 %v889
    %923 = vmatprep.subr.bf16.mxu0 %v892
    %924 = vmatpush1.bf16.msra.mxu0 %v891
    %925 = vmatprep.subr.bf16.mxu0 %v894
    %926 = vmatpush1.bf16.msra.mxu0 %v893
    %927 = vmatprep.subr.bf16.mxu0 %v896
    %928 = vmatpush1.bf16.msra.mxu0 %v895
    %929 = vmatprep.subr.bf16.mxu0 %v898
    %930 = vmatpush1.bf16.msra.mxu0 %v897
    %931 = vmatprep.subr.bf16.mxu0 %v900
    %932 = vmatpush1.bf16.msra.mxu0 %v899
    %933 = vmatprep.subr.bf16.mxu0 %v902
    %934 = vmatpush1.bf16.msra.mxu0 %v901
    %935 = vmatprep.subr.bf16.mxu0 %v904
    %936 = vmatpush1.bf16.msra.mxu0 %v903
    %937 = vmatprep.subr.bf16.mxu0 0
    %938 = vmatpush1.bf16.msra.mxu0 0
    %939 = vmatprep.subr.bf16.mxu0 0
    %940 = vmatpush1.bf16.msra.mxu0 0
    %941 = vmatprep.subr.bf16.mxu0 0
    %942 = vmatpush1.bf16.msra.mxu0 0
    %943 = vmatprep.subr.bf16.mxu0 0
    %944 = vmatpush1.bf16.msra.mxu0 0
    %945 = vmatprep.subr.bf16.mxu0 0
    %946 = vmatpush1.bf16.msra.mxu0 0
    %947 = vmatprep.subr.bf16.mxu0 0
    %948 = vmatpush1.bf16.msra.mxu0 0
    %949 = vmatprep.subr.bf16.mxu0 0
    %950 = vmatpush1.bf16.msra.mxu0 0
    %951 = vmatprep.subr.bf16.mxu0 0
    %952 = vmatpush1.bf16.msra.mxu0 0
    %953 = vmatprep.mubr.bf16.mxu0 0
    %954 = vmatmul.mubr.bf16.gmra.mrb[0].mxu0 %v810
    %v955 = vpop.f32.mrb[0].mxu0
    %v956 = vadd.f32 %v834, %v955
    %v957 = vpop.f32.mrb[0].mxu0
    %v958 = vadd.f32 %v838, %v957
    %v959 = vpop.f32.mrb[0].mxu0
    %v960 = vpop.f32.mrb[0].mxu0
    %961 = vdwg.mxu0
    %v962 = vmax.f32 %v956, 0.0
    %v963 = vmax.f32 %v958, 0.0
    %v964 = vpack.c.bf16 %v962, %v962
    %v965 = vpack.c.bf16 %v963, %v963
    %s966 = scalar_lea.vmem [#allocation7], 128
    %v967 = vld [vmem:[%s966] sm:$0xf]
    %v968 = vld [vmem:[%s966 + $0x4] sm:$0xf]
    %v969 = vld [vmem:[%s966 + $0x8] sm:$0xf]
    %v970 = vld [vmem:[%s966 + $0xc] sm:$0xf]
    %v971 = vld [vmem:[%s966 + $0x10] sm:$0xf]
    %v972 = vld [vmem:[%s966 + $0x14] sm:$0xf]
    %v973 = vld [vmem:[%s966 + $0x18] sm:$0xf]
    %v974 = vld [vmem:[%s966 + $0x1c] sm:$0xf]
    %v975 = vld [vmem:[%s966 + $0x20] sm:$0xf]
    %v976 = vld [vmem:[%s966 + $0x24] sm:$0xf]
    %v977 = vld [vmem:[%s966 + $0x28] sm:$0xf]
    %v978 = vld [vmem:[%s966 + $0x2c] sm:$0xf]
    %v979 = vld [vmem:[%s966 + $0x30] sm:$0xf]
    %v980 = vld [vmem:[%s966 + $0x34] sm:$0xf]
    %v981 = vld [vmem:[%s966 + $0x38] sm:$0xf]
    %v982 = vld [vmem:[%s966 + $0x3c] sm:$0xf]
    %v983 = vld [vmem:[%s966 + $0x40] sm:$0xf]
    %v984 = vld [vmem:[%s966 + $0x44] sm:$0xf]
    %v985 = vld [vmem:[%s966 + $0x48] sm:$0xf]
    %v986 = vld [vmem:[%s966 + $0x4c] sm:$0xf]
    %v987 = vld [vmem:[%s966 + $0x50] sm:$0xf]
    %v988 = vld [vmem:[%s966 + $0x54] sm:$0xf]
    %v989 = vld [vmem:[%s966 + $0x58] sm:$0xf]
    %v990 = vld [vmem:[%s966 + $0x5c] sm:$0xf]
    %v991 = vld [vmem:[%s966 + $0x60] sm:$0xf]
    %v992 = vld [vmem:[%s966 + $0x64] sm:$0xf]
    %v993 = vld [vmem:[%s966 + $0x68] sm:$0xf]
    %v994 = vld [vmem:[%s966 + $0x6c] sm:$0xf]
    %v995 = vld [vmem:[%s966 + $0x70] sm:$0xf]
    %v996 = vld [vmem:[%s966 + $0x74] sm:$0xf]
    %v997 = vld [vmem:[%s966 + $0x78] sm:$0xf]
    %v998 = vld [vmem:[%s966 + $0x7c] sm:$0xf]
    %s999 = scalar_lea.vmem %s10, 1
    %v1000 = vld [vmem:[%s999] sm:$0x1]
    %v1002 = vlaneseq
    %v1003 = vshrl.u32 %v1002, 7
    %v1004 = vsub.s32 0, %v1003
    %v1005 = vrot.slane %v1000, %v1004
    %v1039 = vunpack.c.l.b16 %v967
    %v1040 = vunpack.c.l.b16 %v968
    %v1041 = vunpack.c.l.b16 %v969
    %v1042 = vunpack.c.l.b16 %v970
    %v1043 = vunpack.c.l.b16 %v971
    %v1044 = vunpack.c.l.b16 %v972
    %v1045 = vunpack.c.l.b16 %v973
    %v1046 = vunpack.c.l.b16 %v974
    %v1047 = vunpack.c.l.b16 %v975
    %v1048 = vunpack.c.l.b16 %v976
    %v1049 = vunpack.c.l.b16 %v977
    %v1050 = vunpack.c.l.b16 %v978
    %v1051 = vunpack.c.l.b16 %v979
    %v1052 = vunpack.c.l.b16 %v980
    %v1053 = vunpack.c.l.b16 %v981
    %v1054 = vunpack.c.l.b16 %v982
    %v1055 = vunpack.c.l.b16 %v983
    %v1056 = vunpack.c.l.b16 %v984
    %v1057 = vunpack.c.l.b16 %v985
    %v1058 = vunpack.c.l.b16 %v986
    %v1059 = vunpack.c.l.b16 %v987
    %v1060 = vunpack.c.l.b16 %v988
    %v1061 = vunpack.c.l.b16 %v989
    %v1062 = vunpack.c.l.b16 %v990
    %v1063 = vunpack.c.l.b16 %v991
    %v1064 = vunpack.c.l.b16 %v992
    %v1065 = vunpack.c.l.b16 %v993
    %v1066 = vunpack.c.l.b16 %v994
    %v1067 = vunpack.c.l.b16 %v995
    %v1068 = vunpack.c.l.b16 %v996
    %v1069 = vunpack.c.l.b16 %v997
    %v1070 = vunpack.c.l.b16 %v998
    %v1071 = vpack.c.b16 %v1040, %v1039
    %v1072 = vpack.c.b16 %v1042, %v1041
    %v1073 = vpack.c.b16 %v1044, %v1043
    %v1074 = vpack.c.b16 %v1046, %v1045
    %v1075 = vpack.c.b16 %v1048, %v1047
    %v1076 = vpack.c.b16 %v1050, %v1049
    %v1077 = vpack.c.b16 %v1052, %v1051
    %v1078 = vpack.c.b16 %v1054, %v1053
    %v1079 = vpack.c.b16 %v1056, %v1055
    %v1080 = vpack.c.b16 %v1058, %v1057
    %v1081 = vpack.c.b16 %v1060, %v1059
    %v1082 = vpack.c.b16 %v1062, %v1061
    %v1083 = vpack.c.b16 %v1064, %v1063
    %v1084 = vpack.c.b16 %v1066, %v1065
    %v1085 = vpack.c.b16 %v1068, %v1067
    %v1086 = vpack.c.b16 %v1070, %v1069
    %1103 = vmatprep.subr.bf16.mxu0 0
    %1104 = vmatpush1.bf16.msra.mxu0 %v1071
    %1105 = vmatprep.subr.bf16.mxu0 0
    %1106 = vmatpush1.bf16.msra.mxu0 %v1072
    %1107 = vmatprep.subr.bf16.mxu0 0
    %1108 = vmatpush1.bf16.msra.mxu0 %v1073
    %1109 = vmatprep.subr.bf16.mxu0 0
    %1110 = vmatpush1.bf16.msra.mxu0 %v1074
    %1111 = vmatprep.subr.bf16.mxu0 0
    %1112 = vmatpush1.bf16.msra.mxu0 %v1075
    %1113 = vmatprep.subr.bf16.mxu0 0
    %1114 = vmatpush1.bf16.msra.mxu0 %v1076
    %1115 = vmatprep.subr.bf16.mxu0 0
    %1116 = vmatpush1.bf16.msra.mxu0 %v1077
    %1117 = vmatprep.subr.bf16.mxu0 0
    %1118 = vmatpush1.bf16.msra.mxu0 %v1078
    %1119 = vmatprep.subr.bf16.mxu0 0
    %1120 = vmatpush1.bf16.msra.mxu0 %v1079
    %1121 = vmatprep.subr.bf16.mxu0 0
    %1122 = vmatpush1.bf16.msra.mxu0 %v1080
    %1123 = vmatprep.subr.bf16.mxu0 0
    %1124 = vmatpush1.bf16.msra.mxu0 %v1081
    %1125 = vmatprep.subr.bf16.mxu0 0
    %1126 = vmatpush1.bf16.msra.mxu0 %v1082
    %1127 = vmatprep.subr.bf16.mxu0 0
    %1128 = vmatpush1.bf16.msra.mxu0 %v1083
    %1129 = vmatprep.subr.bf16.mxu0 0
    %1130 = vmatpush1.bf16.msra.mxu0 %v1084
    %1131 = vmatprep.subr.bf16.mxu0 0
    %1132 = vmatpush1.bf16.msra.mxu0 %v1085
    %1133 = vmatprep.subr.bf16.mxu0 0
    %1134 = vmatpush1.bf16.msra.mxu0 %v1086
    %1135 = vmatprep.mubr.bf16.mxu0 %v965
    %1136 = vmatmul.mubr.bf16.gmra.mrb[0].mxu0 %v964
    %v1137 = vpop.f32.mrb[0].mxu0
    %v1138 = vadd.f32 %v1005, %v1137
    %v1139 = vpop.f32.mrb[0].mxu0
    %v1140 = vpop.f32.mrb[0].mxu0
    %v1141 = vpop.f32.mrb[0].mxu0
    %1142 = vdwg.mxu0
    %v1143 = vadd.f32 %v809, %v1138
    %s1144 = scalar_lea.vmem %s11, 1
    %v1145 = vld [vmem:[%s1144] sm:$0x1]
    %s1146 = scalar_lea.vmem %s12, 1
    %v1147 = vld [vmem:[%s1146] sm:$0x1]
    %1148 = vadd.xlane.f32.xlu0 %v1143
    %v1149 = vpop.xlane.xlu0 %1148
    %v1150 = vmul.f32 %v1149, %v277
    %v1151 = vmul.f32 %v1143, %v1143
    %1152 = vadd.xlane.f32.xlu0 %v1151
    %v1153 = vpop.xlane.xlu0 %1152
    %v1154 = vmul.f32 %v1153, %v277
    %v1155 = vmul.f32 %v1150, %v1150
    %v1156 = vsub.f32 %v1154, %v1155
    %v1157 = vmax.f32 %v1156, 0.0
    %v1158 = vadd.f32 %v1157, 1e-05
    %v1159 = vrsqrt.pop %v1158
    %v1160 = vsub.f32 %v1143, %v1150
    %v1162 = vlaneseq
    %v1163 = vshrl.u32 %v1162, 7
    %v1164 = vsub.s32 0, %v1163
    %v1165 = vrot.slane %v1145, %v1164
    %v1167 = vmul.f32 %v1159, %v1165
    %v1168 = vmul.f32 %v1160, %v1167
    %v1170 = vlaneseq
    %v1171 = vshrl.u32 %v1170, 7
    %v1172 = vsub.s32 0, %v1171
    %v1173 = vrot.slane %v1147, %v1172
    %v1175 = vadd.f32 %v1168, %v1173
    %v1176 = vpack.c.bf16 %v1175, %v1175
    %s1177 = scalar_lea.vmem [#allocation2], 128
    %v1178 = vld [vmem:[%s1177] sm:$0xf]
    %v1179 = vld [vmem:[%s1177 + $0x4] sm:$0xf]
    %v1180 = vld [vmem:[%s1177 + $0x8] sm:$0xf]
    %v1181 = vld [vmem:[%s1177 + $0xc] sm:$0xf]
    %v1182 = vld [vmem:[%s1177 + $0x10] sm:$0xf]
    %v1183 = vld [vmem:[%s1177 + $0x14] sm:$0xf]
    %v1184 = vld [vmem:[%s1177 + $0x18] sm:$0xf]
    %v1185 = vld [vmem:[%s1177 + $0x1c] sm:$0xf]
    %v1186 = vld [vmem:[%s1177 + $0x20] sm:$0xf]
    %v1187 = vld [vmem:[%s1177 + $0x24] sm:$0xf]
    %v1188 = vld [vmem:[%s1177 + $0x28] sm:$0xf]
    %v1189 = vld [vmem:[%s1177 + $0x2c] sm:$0xf]
    %v1190 = vld [vmem:[%s1177 + $0x30] sm:$0xf]
    %v1191 = vld [vmem:[%s1177 + $0x34] sm:$0xf]
    %v1192 = vld [vmem:[%s1177 + $0x38] sm:$0xf]
    %v1193 = vld [vmem:[%s1177 + $0x3c] sm:$0xf]
    %s1194 = scalar_lea.vmem %s4, 2
    %v1195 = vld [vmem:[%s1194] sm:$0x1]
    %v1197 = vlaneseq
    %v1198 = vshrl.u32 %v1197, 7
    %v1199 = vsub.s32 0, %v1198
    %v1200 = vrot.slane %v1195, %v1199
    %v1218 = vunpack.c.l.b16 %v1178
    %v1219 = vunpack.c.l.b16 %v1179
    %v1220 = vunpack.c.l.b16 %v1180
    %v1221 = vunpack.c.l.b16 %v1181
    %v1222 = vunpack.c.l.b16 %v1182
    %v1223 = vunpack.c.l.b16 %v1183
    %v1224 = vunpack.c.l.b16 %v1184
    %v1225 = vunpack.c.l.b16 %v1185
    %v1226 = vunpack.c.l.b16 %v1186
    %v1227 = vunpack.c.l.b16 %v1187
    %v1228 = vunpack.c.l.b16 %v1188
    %v1229 = vunpack.c.l.b16 %v1189
    %v1230 = vunpack.c.l.b16 %v1190
    %v1231 = vunpack.c.l.b16 %v1191
    %v1232 = vunpack.c.l.b16 %v1192
    %v1233 = vunpack.c.l.b16 %v1193
    %v1234 = vpack.c.b16 %v1219, %v1218
    %v1235 = vpack.c.b16 %v1221, %v1220
    %v1236 = vpack.c.b16 %v1223, %v1222
    %v1237 = vpack.c.b16 %v1225, %v1224
    %v1238 = vpack.c.b16 %v1227, %v1226
    %v1239 = vpack.c.b16 %v1229, %v1228
    %v1240 = vpack.c.b16 %v1231, %v1230
    %v1241 = vpack.c.b16 %v1233, %v1232
    %1250 = vmatprep.subr.bf16.mxu0 0
    %1251 = vmatpush1.bf16.msra.mxu0 %v1234
    %1252 = vmatprep.subr.bf16.mxu0 0
    %1253 = vmatpush1.bf16.msra.mxu0 %v1235
    %1254 = vmatprep.subr.bf16.mxu0 0
    %1255 = vmatpush1.bf16.msra.mxu0 %v1236
    %1256 = vmatprep.subr.bf16.mxu0 0
    %1257 = vmatpush1.bf16.msra.mxu0 %v1237
    %1258 = vmatprep.subr.bf16.mxu0 0
    %1259 = vmatpush1.bf16.msra.mxu0 %v1238
    %1260 = vmatprep.subr.bf16.mxu0 0
    %1261 = vmatpush1.bf16.msra.mxu0 %v1239
    %1262 = vmatprep.subr.bf16.mxu0 0
    %1263 = vmatpush1.bf16.msra.mxu0 %v1240
    %1264 = vmatprep.subr.bf16.mxu0 0
    %1265 = vmatpush1.bf16.msra.mxu0 %v1241
    %1266 = vmatprep.subr.bf16.mxu0 0
    %1267 = vmatpush1.bf16.msra.mxu0 0
    %1268 = vmatprep.subr.bf16.mxu0 0
    %1269 = vmatpush1.bf16.msra.mxu0 0
    %1270 = vmatprep.subr.bf16.mxu0 0
    %1271 = vmatpush1.bf16.msra.mxu0 0
    %1272 = vmatprep.subr.bf16.mxu0 0
    %1273 = vmatpush1.bf16.msra.mxu0 0
    %1274 = vmatprep.subr.bf16.mxu0 0
    %1275 = vmatpush1.bf16.msra.mxu0 0
    %1276 = vmatprep.subr.bf16.mxu0 0
    %1277 = vmatpush1.bf16.msra.mxu0 0
    %1278 = vmatprep.subr.bf16.mxu0 0
    %1279 = vmatpush1.bf16.msra.mxu0 0
    %1280 = vmatprep.subr.bf16.mxu0 0
    %1281 = vmatpush1.bf16.msra.mxu0 0
    %1282 = vmatprep.mubr.bf16.mxu0 0
    %1283 = vmatmul.mubr.bf16.gmra.mrb[0].mxu0 %v1176
    %v1284 = vpop.f32.mrb[0].mxu0
    %v1285 = vadd.f32 %v1200, %v1284
    %v1286 = vpop.f32.mrb[0].mxu0
    %v1287 = vpop.f32.mrb[0].mxu0
    %v1288 = vpop.f32.mrb[0].mxu0
    %1289 = vdwg.mxu0
    %s1290 = scalar_lea.vmem %s5, 2
    %v1291 = vld [vmem:[%s1290] sm:$0x1]
    %s1292 = scalar_lea.vmem %s6, 2
    %v1293 = vld [vmem:[%s1292] sm:$0x1]
    %1294 = vadd.xlane.f32.xlu0 %v1285
    %v1295 = vpop.xlane.xlu0 %1294
    %v1296 = vmul.f32 %v1295, %v277
    %v1297 = vmul.f32 %v1285, %v1285
    %1298 = vadd.xlane.f32.xlu0 %v1297
    %v1299 = vpop.xlane.xlu0 %1298
    %v1300 = vmul.f32 %v1299, %v277
    %v1301 = vmul.f32 %v1296, %v1296
    %v1302 = vsub.f32 %v1300, %v1301
    %v1303 = vmax.f32 %v1302, 0.0
    %v1304 = vadd.f32 %v1303, 1e-05
    %v1305 = vrsqrt.pop %v1304
    %v1306 = vsub.f32 %v1285, %v1296
    %v1308 = vlaneseq
    %v1309 = vshrl.u32 %v1308, 7
    %v1310 = vsub.s32 0, %v1309
    %v1311 = vrot.slane %v1291, %v1310
    %v1313 = vmul.f32 %v1305, %v1311
    %v1314 = vmul.f32 %v1306, %v1313
    %v1316 = vlaneseq
    %v1317 = vshrl.u32 %v1316, 7
    %v1318 = vsub.s32 0, %v1317
    %v1319 = vrot.slane %v1293, %v1318
    %v1321 = vadd.f32 %v1314, %v1319
    %v1322 = vpack.c.bf16 %v1321, %v1321
    %s1323 = scalar_lea.vmem [#allocation5], 256
    %v1324 = vld [vmem:[%s1323] sm:$0xff]
    %v1325 = vld [vmem:[%s1323 + $0x8] sm:$0xff]
    %v1326 = vld [vmem:[%s1323 + $0x10] sm:$0xff]
    %v1327 = vld [vmem:[%s1323 + $0x18] sm:$0xff]
    %v1328 = vld [vmem:[%s1323 + $0x20] sm:$0xff]
    %v1329 = vld [vmem:[%s1323 + $0x28] sm:$0xff]
    %v1330 = vld [vmem:[%s1323 + $0x30] sm:$0xff]
    %v1331 = vld [vmem:[%s1323 + $0x38] sm:$0xff]
    %v1332 = vld [vmem:[%s1323 + $0x40] sm:$0xff]
    %v1333 = vld [vmem:[%s1323 + $0x48] sm:$0xff]
    %v1334 = vld [vmem:[%s1323 + $0x50] sm:$0xff]
    %v1335 = vld [vmem:[%s1323 + $0x58] sm:$0xff]
    %v1336 = vld [vmem:[%s1323 + $0x60] sm:$0xff]
    %v1337 = vld [vmem:[%s1323 + $0x68] sm:$0xff]
    %v1338 = vld [vmem:[%s1323 + $0x70] sm:$0xff]
    %v1339 = vld [vmem:[%s1323 + $0x78] sm:$0xff]
    %s1340 = scalar_lea.vmem %s8, 4
    %v1341 = vld [vmem:[%s1340] sm:$0x3]
    %v1343 = vlaneseq
    %v1344 = vshrl.u32 %v1343, 7
    %v1345 = vsub.s32 0, %v1344
    %v1346 = vrot.slane %v1341, %v1345
    %v1347 = vlaneseq
    %v1348 = vshrl.u32 %v1347, 7
    %v1349 = vsub.s32 1, %v1348
    %v1350 = vrot.slane %v1341, %v1349
    %v1369 = vunpack.c.l.b16 %v1324
    %v1370 = vunpack.c.h.b16 %v1324
    %v1371 = vunpack.c.l.b16 %v1325
    %v1372 = vunpack.c.h.b16 %v1325
    %v1373 = vunpack.c.l.b16 %v1326
    %v1374 = vunpack.c.h.b16 %v1326
    %v1375 = vunpack.c.l.b16 %v1327
    %v1376 = vunpack.c.h.b16 %v1327
    %v1377 = vunpack.c.l.b16 %v1328
    %v1378 = vunpack.c.h.b16 %v1328
    %v1379 = vunpack.c.l.b16 %v1329
    %v1380 = vunpack.c.h.b16 %v1329
    %v1381 = vunpack.c.l.b16 %v1330
    %v1382 = vunpack.c.h.b16 %v1330
    %v1383 = vunpack.c.l.b16 %v1331
    %v1384 = vunpack.c.h.b16 %v1331
    %v1385 = vunpack.c.l.b16 %v1332
    %v1386 = vunpack.c.h.b16 %v1332
    %v1387 = vunpack.c.l.b16 %v1333
    %v1388 = vunpack.c.h.b16 %v1333
    %v1389 = vunpack.c.l.b16 %v1334
    %v1390 = vunpack.c.h.b16 %v1334
    %v1391 = vunpack.c.l.b16 %v1335
    %v1392 = vunpack.c.h.b16 %v1335
    %v1393 = vunpack.c.l.b16 %v1336
    %v1394 = vunpack.c.h.b16 %v1336
    %v1395 = vunpack.c.l.b16 %v1337
    %v1396 = vunpack.c.h.b16 %v1337
    %v1397 = vunpack.c.l.b16 %v1338
    %v1398 = vunpack.c.h.b16 %v1338
    %v1399 = vunpack.c.l.b16 %v1339
    %v1400 = vunpack.c.h.b16 %v1339
    %v1401 = vpack.c.b16 %v1371, %v1369
    %v1402 = vpack.c.b16 %v1372, %v1370
    %v1403 = vpack.c.b16 %v1375, %v1373
    %v1404 = vpack.c.b16 %v1376, %v1374
    %v1405 = vpack.c.b16 %v1379, %v1377
    %v1406 = vpack.c.b16 %v1380, %v1378
    %v1407 = vpack.c.b16 %v1383, %v1381
    %v1408 = vpack.c.b16 %v1384, %v1382
    %v1409 = vpack.c.b16 %v1387, %v1385
    %v1410 = vpack.c.b16 %v1388, %v1386
    %v1411 = vpack.c.b16 %v1391, %v1389
    %v1412 = vpack.c.b16 %v1392, %v1390
    %v1413 = vpack.c.b16 %v1395, %v1393
    %v1414 = vpack.c.b16 %v1396, %v1394
    %v1415 = vpack.c.b16 %v1399, %v1397
    %v1416 = vpack.c.b16 %v1400, %v1398
    %1433 = vmatprep.subr.bf16.mxu0 %v1402
    %1434 = vmatpush1.bf16.msra.mxu0 %v1401
    %1435 = vmatprep.subr.bf16.mxu0 %v1404
    %1436 = vmatpush1.bf16.msra.mxu0 %v1403
    %1437 = vmatprep.subr.bf16.mxu0 %v1406
    %1438 = vmatpush1.bf16.msra.mxu0 %v1405
    %1439 = vmatprep.subr.bf16.mxu0 %v1408
    %1440 = vmatpush1.bf16.msra.mxu0 %v1407
    %1441 = vmatprep.subr.bf16.mxu0 %v1410
    %1442 = vmatpush1.bf16.msra.mxu0 %v1409
    %1443 = vmatprep.subr.bf16.mxu0 %v1412
    %1444 = vmatpush1.bf16.msra.mxu0 %v1411
    %1445 = vmatprep.subr.bf16.mxu0 %v1414
    %1446 = vmatpush1.bf16.msra.mxu0 %v1413
    %1447 = vmatprep.subr.bf16.mxu0 %v1416
    %1448 = vmatpush1.bf16.msra.mxu0 %v1415
    %1449 = vmatprep.subr.bf16.mxu0 0
    %1450 = vmatpush1.bf16.msra.mxu0 0
    %1451 = vmatprep.subr.bf16.mxu0 0
    %1452 = vmatpush1.bf16.msra.mxu0 0
    %1453 = vmatprep.subr.bf16.mxu0 0
    %1454 = vmatpush1.bf16.msra.mxu0 0
    %1455 = vmatprep.subr.bf16.mxu0 0
    %1456 = vmatpush1.bf16.msra.mxu0 0
    %1457 = vmatprep.subr.bf16.mxu0 0
    %1458 = vmatpush1.bf16.msra.mxu0 0
    %1459 = vmatprep.subr.bf16.mxu0 0
    %1460 = vmatpush1.bf16.msra.mxu0 0
    %1461 = vmatprep.subr.bf16.mxu0 0
    %1462 = vmatpush1.bf16.msra.mxu0 0
    %1463 = vmatprep.subr.bf16.mxu0 0
    %1464 = vmatpush1.bf16.msra.mxu0 0
    %1465 = vmatprep.mubr.bf16.mxu0 0
    %1466 = vmatmul.mubr.bf16.gmra.mrb[0].mxu0 %v1322
    %v1467 = vpop.f32.mrb[0].mxu0
    %v1468 = vadd.f32 %v1346, %v1467
    %v1469 = vpop.f32.mrb[0].mxu0
    %v1470 = vadd.f32 %v1350, %v1469
    %v1471 = vpop.f32.mrb[0].mxu0
    %v1472 = vpop.f32.mrb[0].mxu0
    %1473 = vdwg.mxu0
    %v1474 = vmax.f32 %v1468, 0.0
    %v1475 = vmax.f32 %v1470, 0.0
    %v1476 = vpack.c.bf16 %v1474, %v1474
    %v1477 = vpack.c.bf16 %v1475, %v1475
    %s1478 = scalar_lea.vmem [#allocation7], 256
    %v1479 = vld [vmem:[%s1478] sm:$0xf]
    %v1480 = vld [vmem:[%s1478 + $0x4] sm:$0xf]
    %v1481 = vld [vmem:[%s1478 + $0x8] sm:$0xf]
    %v1482 = vld [vmem:[%s1478 + $0xc] sm:$0xf]
    %v1483 = vld [vmem:[%s1478 + $0x10] sm:$0xf]
    %v1484 = vld [vmem:[%s1478 + $0x14] sm:$0xf]
    %v1485 = vld [vmem:[%s1478 + $0x18] sm:$0xf]
    %v1486 = vld [vmem:[%s1478 + $0x1c] sm:$0xf]
    %v1487 = vld [vmem:[%s1478 + $0x20] sm:$0xf]
    %v1488 = vld [vmem:[%s1478 + $0x24] sm:$0xf]
    %v1489 = vld [vmem:[%s1478 + $0x28] sm:$0xf]
    %v1490 = vld [vmem:[%s1478 + $0x2c] sm:$0xf]
    %v1491 = vld [vmem:[%s1478 + $0x30] sm:$0xf]
    %v1492 = vld [vmem:[%s1478 + $0x34] sm:$0xf]
    %v1493 = vld [vmem:[%s1478 + $0x38] sm:$0xf]
    %v1494 = vld [vmem:[%s1478 + $0x3c] sm:$0xf]
    %v1495 = vld [vmem:[%s1478 + $0x40] sm:$0xf]
    %v1496 = vld [vmem:[%s1478 + $0x44] sm:$0xf]
    %v1497 = vld [vmem:[%s1478 + $0x48] sm:$0xf]
    %v1498 = vld [vmem:[%s1478 + $0x4c] sm:$0xf]
    %v1499 = vld [vmem:[%s1478 + $0x50] sm:$0xf]
    %v1500 = vld [vmem:[%s1478 + $0x54] sm:$0xf]
    %v1501 = vld [vmem:[%s1478 + $0x58] sm:$0xf]
    %v1502 = vld [vmem:[%s1478 + $0x5c] sm:$0xf]
    %v1503 = vld [vmem:[%s1478 + $0x60] sm:$0xf]
    %v1504 = vld [vmem:[%s1478 + $0x64] sm:$0xf]
    %v1505 = vld [vmem:[%s1478 + $0x68] sm:$0xf]
    %v1506 = vld [vmem:[%s1478 + $0x6c] sm:$0xf]
    %v1507 = vld [vmem:[%s1478 + $0x70] sm:$0xf]
    %v1508 = vld [vmem:[%s1478 + $0x74] sm:$0xf]
    %v1509 = vld [vmem:[%s1478 + $0x78] sm:$0xf]
    %v1510 = vld [vmem:[%s1478 + $0x7c] sm:$0xf]
    %s1511 = scalar_lea.vmem %s10, 2
    %v1512 = vld [vmem:[%s1511] sm:$0x1]
    %v1514 = vlaneseq
    %v1515 = vshrl.u32 %v1514, 7
    %v1516 = vsub.s32 0, %v1515
    %v1517 = vrot.slane %v1512, %v1516
    %v1551 = vunpack.c.l.b16 %v1479
    %v1552 = vunpack.c.l.b16 %v1480
    %v1553 = vunpack.c.l.b16 %v1481
    %v1554 = vunpack.c.l.b16 %v1482
    %v1555 = vunpack.c.l.b16 %v1483
    %v1556 = vunpack.c.l.b16 %v1484
    %v1557 = vunpack.c.l.b16 %v1485
    %v1558 = vunpack.c.l.b16 %v1486
    %v1559 = vunpack.c.l.b16 %v1487
    %v1560 = vunpack.c.l.b16 %v1488
    %v1561 = vunpack.c.l.b16 %v1489
    %v1562 = vunpack.c.l.b16 %v1490
    %v1563 = vunpack.c.l.b16 %v1491
    %v1564 = vunpack.c.l.b16 %v1492
    %v1565 = vunpack.c.l.b16 %v1493
    %v1566 = vunpack.c.l.b16 %v1494
    %v1567 = vunpack.c.l.b16 %v1495
    %v1568 = vunpack.c.l.b16 %v1496
    %v1569 = vunpack.c.l.b16 %v1497
    %v1570 = vunpack.c.l.b16 %v1498
    %v1571 = vunpack.c.l.b16 %v1499
    %v1572 = vunpack.c.l.b16 %v1500
    %v1573 = vunpack.c.l.b16 %v1501
    %v1574 = vunpack.c.l.b16 %v1502
    %v1575 = vunpack.c.l.b16 %v1503
    %v1576 = vunpack.c.l.b16 %v1504
    %v1577 = vunpack.c.l.b16 %v1505
    %v1578 = vunpack.c.l.b16 %v1506
    %v1579 = vunpack.c.l.b16 %v1507
    %v1580 = vunpack.c.l.b16 %v1508
    %v1581 = vunpack.c.l.b16 %v1509
    %v1582 = vunpack.c.l.b16 %v1510
    %v1583 = vpack.c.b16 %v1552, %v1551
    %v1584 = vpack.c.b16 %v1554, %v1553
    %v1585 = vpack.c.b16 %v1556, %v1555
    %v1586 = vpack.c.b16 %v1558, %v1557
    %v1587 = vpack.c.b16 %v1560, %v1559
    %v1588 = vpack.c.b16 %v1562, %v1561
    %v1589 = vpack.c.b16 %v1564, %v1563
    %v1590 = vpack.c.b16 %v1566, %v1565
    %v1591 = vpack.c.b16 %v1568, %v1567
    %v1592 = vpack.c.b16 %v1570, %v1569
    %v1593 = vpack.c.b16 %v1572, %v1571
    %v1594 = vpack.c.b16 %v1574, %v1573
    %v1595 = vpack.c.b16 %v1576, %v1575
    %v1596 = vpack.c.b16 %v1578, %v1577
    %v1597 = vpack.c.b16 %v1580, %v1579
    %v1598 = vpack.c.b16 %v1582, %v1581
    %1615 = vmatprep.subr.bf16.mxu0 0
    %1616 = vmatpush1.bf16.msra.mxu0 %v1583
    %1617 = vmatprep.subr.bf16.mxu0 0
    %1618 = vmatpush1.bf16.msra.mxu0 %v1584
    %1619 = vmatprep.subr.bf16.mxu0 0
    %1620 = vmatpush1.bf16.msra.mxu0 %v1585
    %1621 = vmatprep.subr.bf16.mxu0 0
    %1622 = vmatpush1.bf16.msra.mxu0 %v1586
    %1623 = vmatprep.subr.bf16.mxu0 0
    %1624 = vmatpush1.bf16.msra.mxu0 %v1587
    %1625 = vmatprep.subr.bf16.mxu0 0
    %1626 = vmatpush1.bf16.msra.mxu0 %v1588
    %1627 = vmatprep.subr.bf16.mxu0 0
    %1628 = vmatpush1.bf16.msra.mxu0 %v1589
    %1629 = vmatprep.subr.bf16.mxu0 0
    %1630 = vmatpush1.bf16.msra.mxu0 %v1590
    %1631 = vmatprep.subr.bf16.mxu0 0
    %1632 = vmatpush1.bf16.msra.mxu0 %v1591
    %1633 = vmatprep.subr.bf16.mxu0 0
    %1634 = vmatpush1.bf16.msra.mxu0 %v1592
    %1635 = vmatprep.subr.bf16.mxu0 0
    %1636 = vmatpush1.bf16.msra.mxu0 %v1593
    %1637 = vmatprep.subr.bf16.mxu0 0
    %1638 = vmatpush1.bf16.msra.mxu0 %v1594
    %1639 = vmatprep.subr.bf16.mxu0 0
    %1640 = vmatpush1.bf16.msra.mxu0 %v1595
    %1641 = vmatprep.subr.bf16.mxu0 0
    %1642 = vmatpush1.bf16.msra.mxu0 %v1596
    %1643 = vmatprep.subr.bf16.mxu0 0
    %1644 = vmatpush1.bf16.msra.mxu0 %v1597
    %1645 = vmatprep.subr.bf16.mxu0 0
    %1646 = vmatpush1.bf16.msra.mxu0 %v1598
    %1647 = vmatprep.mubr.bf16.mxu0 %v1477
    %1648 = vmatmul.mubr.bf16.gmra.mrb[0].mxu0 %v1476
    %v1649 = vpop.f32.mrb[0].mxu0
    %v1650 = vadd.f32 %v1517, %v1649
    %v1651 = vpop.f32.mrb[0].mxu0
    %v1652 = vpop.f32.mrb[0].mxu0
    %v1653 = vpop.f32.mrb[0].mxu0
    %1654 = vdwg.mxu0
    %v1655 = vadd.f32 %v1321, %v1650
    %s1656 = scalar_lea.vmem %s11, 2
    %v1657 = vld [vmem:[%s1656] sm:$0x1]
    %s1658 = scalar_lea.vmem %s12, 2
    %v1659 = vld [vmem:[%s1658] sm:$0x1]
    %1660 = vadd.xlane.f32.xlu0 %v1655
    %v1661 = vpop.xlane.xlu0 %1660
    %v1662 = vmul.f32 %v1661, %v277
    %v1663 = vmul.f32 %v1655, %v1655
    %1664 = vadd.xlane.f32.xlu0 %v1663
    %v1665 = vpop.xlane.xlu0 %1664
    %v1666 = vmul.f32 %v1665, %v277
    %v1667 = vmul.f32 %v1662, %v1662
    %v1668 = vsub.f32 %v1666, %v1667
    %v1669 = vmax.f32 %v1668, 0.0
    %v1670 = vadd.f32 %v1669, 1e-05
    %v1671 = vrsqrt.pop %v1670
    %v1672 = vsub.f32 %v1655, %v1662
    %v1674 = vlaneseq
    %v1675 = vshrl.u32 %v1674, 7
    %v1676 = vsub.s32 0, %v1675
    %v1677 = vrot.slane %v1657, %v1676
    %v1679 = vmul.f32 %v1671, %v1677
    %v1680 = vmul.f32 %v1672, %v1679
    %v1682 = vlaneseq
    %v1683 = vshrl.u32 %v1682, 7
    %v1684 = vsub.s32 0, %v1683
    %v1685 = vrot.slane %v1659, %v1684
    %v1687 = vadd.f32 %v1680, %v1685
    %v1688 = vpack.c.bf16 %v1687, %v1687
    %v1689 = vld [vmem:[%s13] sm:$0xf]
    %v1690 = vld [vmem:[%s13 + $0x4] sm:$0xf]
    %v1691 = vld [vmem:[%s13 + $0x8] sm:$0xf]
    %v1692 = vld [vmem:[%s13 + $0xc] sm:$0xf]
    %v1693 = vld [vmem:[%s13 + $0x10] sm:$0xf]
    %v1694 = vld [vmem:[%s13 + $0x14] sm:$0xf]
    %v1695 = vld [vmem:[%s13 + $0x18] sm:$0xf]
    %v1696 = vld [vmem:[%s13 + $0x1c] sm:$0xf]
    %v1697 = vld [vmem:[%s13 + $0x20] sm:$0xf]
    %v1698 = vld [vmem:[%s13 + $0x24] sm:$0xf]
    %v1699 = vld [vmem:[%s13 + $0x28] sm:$0xf]
    %v1700 = vld [vmem:[%s13 + $0x2c] sm:$0xf]
    %v1701 = vld [vmem:[%s13 + $0x30] sm:$0xf]
    %v1702 = vld [vmem:[%s13 + $0x34] sm:$0xf]
    %v1703 = vld [vmem:[%s13 + $0x38] sm:$0xf]
    %v1704 = vld [vmem:[%s13 + $0x3c] sm:$0xf]
    %v1705 = vld [vmem:[%s14] sm:$0x1]
    %v1707 = vlaneseq
    %v1708 = vshrl.u32 %v1707, 7
    %v1709 = vsub.s32 0, %v1708
    %v1710 = vrot.slane %v1705, %v1709
    %v1728 = vunpack.c.l.b16 %v1689
    %v1729 = vunpack.c.l.b16 %v1690
    %v1730 = vunpack.c.l.b16 %v1691
    %v1731 = vunpack.c.l.b16 %v1692
    %v1732 = vunpack.c.l.b16 %v1693
    %v1733 = vunpack.c.l.b16 %v1694
    %v1734 = vunpack.c.l.b16 %v1695
    %v1735 = vunpack.c.l.b16 %v1696
    %v1736 = vunpack.c.l.b16 %v1697
    %v1737 = vunpack.c.l.b16 %v1698
    %v1738 = vunpack.c.l.b16 %v1699
    %v1739 = vunpack.c.l.b16 %v1700
    %v1740 = vunpack.c.l.b16 %v1701
    %v1741 = vunpack.c.l.b16 %v1702
    %v1742 = vunpack.c.l.b16 %v1703
    %v1743 = vunpack.c.l.b16 %v1704
    %v1744 = vpack.c.b16 %v1729, %v1728
    %v1745 = vpack.c.b16 %v1731, %v1730
    %v1746 = vpack.c.b16 %v1733, %v1732
    %v1747 = vpack.c.b16 %v1735, %v1734
    %v1748 = vpack.c.b16 %v1737, %v1736
    %v1749 = vpack.c.b16 %v1739, %v1738
    %v1750 = vpack.c.b16 %v1741, %v1740
    %v1751 = vpack.c.b16 %v1743, %v1742
    %1760 = vmatprep.subr.bf16.mxu0 0
    %1761 = vmatpush1.bf16.msra.mxu0 %v1744
    %1762 = vmatprep.subr.bf16.mxu0 0
    %1763 = vmatpush1.bf16.msra.mxu0 %v1745
    %1764 = vmatprep.subr.bf16.mxu0 0
    %1765 = vmatpush1.bf16.msra.mxu0 %v1746
    %1766 = vmatprep.subr.bf16.mxu0 0
    %1767 = vmatpush1.bf16.msra.mxu0 %v1747
    %1768 = vmatprep.subr.bf16.mxu0 0
    %1769 = vmatpush1.bf16.msra.mxu0 %v1748
    %1770 = vmatprep.subr.bf16.mxu0 0
    %1771 = vmatpush1.bf16.msra.mxu0 %v1749
    %1772 = vmatprep.subr.bf16.mxu0 0
    %1773 = vmatpush1.bf16.msra.mxu0 %v1750
    %1774 = vmatprep.subr.bf16.mxu0 0
    %1775 = vmatpush1.bf16.msra.mxu0 %v1751
    %1776 = vmatprep.subr.bf16.mxu0 0
    %1777 = vmatpush1.bf16.msra.mxu0 0
    %1778 = vmatprep.subr.bf16.mxu0 0
    %1779 = vmatpush1.bf16.msra.mxu0 0
    %1780 = vmatprep.subr.bf16.mxu0 0
    %1781 = vmatpush1.bf16.msra.mxu0 0
    %1782 = vmatprep.subr.bf16.mxu0 0
    %1783 = vmatpush1.bf16.msra.mxu0 0
    %1784 = vmatprep.subr.bf16.mxu0 0
    %1785 = vmatpush1.bf16.msra.mxu0 0
    %1786 = vmatprep.subr.bf16.mxu0 0
    %1787 = vmatpush1.bf16.msra.mxu0 0
    %1788 = vmatprep.subr.bf16.mxu0 0
    %1789 = vmatpush1.bf16.msra.mxu0 0
    %1790 = vmatprep.subr.bf16.mxu0 0
    %1791 = vmatpush1.bf16.msra.mxu0 0
    %1792 = vmatprep.mubr.bf16.mxu0 0
    %1793 = vmatmul.mubr.bf16.gmra.mrb[0].mxu0 %v1688
    %v1794 = vpop.f32.mrb[0].mxu0
    %v1795 = vadd.f32 %v1710, %v1794
    %v1796 = vpop.f32.mrb[0].mxu0
    %v1797 = vpop.f32.mrb[0].mxu0
    %v1798 = vpop.f32.mrb[0].mxu0
    %1799 = vdwg.mxu0
    %vm1800 = vcmask 64512
    %1801 = vst.msk [vmem:[#allocation8] sm:$0xff] %vm1800, %v1795
    // Predicated region
    $region74: #{tpu_custom_call.1} parent=1 // pred_check
      _
    $region75: #{tpu_custom_call.1} parent=1 // pred_check_branch
      %1803 = sbr.rel (0) target = $region77
    $region76: #{tpu_custom_call.1} parent=1 // pred_region
      %s1805 = ssub.s32 128, 128
      %1806 = vsyncadd [#allocation4], %s1805
      %s1808 = sshll.u32 [#allocation8], 4
      %s1809 = int_to_ptr.vmem [resolvable:$true] %s1808
      %1811 = dma.vmem_to_hbm [thread:$0]  %s1809, 128, %s15, [#allocation4]
    $region77: #{tpu_custom_call.1} parent=1 // pred_fallthru
      _
    // Predicated region
    $region78: #{tpu_custom_call.1} parent=1 // pred_check
      _
    $region79: #{tpu_custom_call.1} parent=1 // pred_check_branch
      %1813 = sbr.rel (0) target = $region81
    $region80: #{tpu_custom_call.1} parent=1 // pred_region
      %1814 = dma.done [#allocation4], 128
    $region81: #{tpu_custom_call.1} parent=1 // pred_fallthru
      _
    %1815 = vsyncpa [#allocation3], 1
    %1816 = vsyncpa [#allocation6], 1
    %1817 = vsyncpa [#allocation4], 1

</llo_original>
